<compile_context>
chip_gen: v6e
topology: v6e:2x2x1
jax: 0.10.0
libtpu: 0.0.40
codegen_flags: <defaults>
</compile_context>

<pallas_src>
import functools

import jax
import jax.numpy as jnp
from jax.experimental import pallas as pl
from jax.experimental.pallas import tpu as pltpu

LANE = 128
SUBLANE = 8


def _round_up(x, m):
    return ((x + m - 1) // m) * m


def _conv_tiles(m):
    """Pick an M tile (multiple of 8) and padded M; prefer >=2 parallel steps."""
    m8 = _round_up(m, SUBLANE)
    tm = min(256, m8)
    if _round_up(m8, tm) // tm < 2 and tm % 16 == 0:
        tm //= 2  # give the megacore (v7x: 2 TCs) at least 2 parallel steps
    return tm, _round_up(m8, tm)


# ----------------------------------------------------------------------------
# Pallas kernel 1: tap-accumulated matmul + bias + LeakyReLU (Conv2d core).
#   grid = (M/tm [parallel], N/tn [parallel], k*k [arbitrary reduction])
#   bf16 MXU inputs, f32 VMEM accumulator, lane-dense (tn = multiple of 128)
#   output stores.
# ----------------------------------------------------------------------------
def _tap_matmul_kernel(p_ref, w_ref, b_ref, o_ref, acc_ref, *, negative_slope):
    kk = pl.program_id(2)

    @pl.when(kk == 0)
    def _init():
        acc_ref[...] = jnp.zeros_like(acc_ref)

    acc_ref[...] += jnp.dot(p_ref[0], w_ref[0],
                            preferred_element_type=jnp.float32)

    @pl.when(kk == pl.num_programs(2) - 1)
    def _finalize():
        r = acc_ref[...] + b_ref[...]
        if negative_slope is not None:
            r = jnp.where(r >= 0, r, negative_slope * r)
        o_ref[...] = r.astype(o_ref.dtype)


def tap_matmul(patches, weights, bias, *, tm, negative_slope,
               out_dtype=jnp.bfloat16):
    """patches: (KK, M_pad, C) bf16; weights: (KK, C, N_pad) bf16;
    bias: (1, N_pad) f32 -> (M_pad, N_pad) out_dtype."""
    KK, M_pad, C = patches.shape
    _, _, N_pad = weights.shape
    assert M_pad % tm == 0 and N_pad % LANE == 0
    tn = min(256, N_pad)
    if N_pad % tn != 0:
        tn = LANE

    grid = (M_pad // tm, N_pad // tn, KK)
    kernel = functools.partial(_tap_matmul_kernel,
                               negative_slope=negative_slope)

    flops = 2 * M_pad * N_pad * C * KK
    bytes_accessed = (patches.size * patches.dtype.itemsize
                      + weights.size * weights.dtype.itemsize
                      + bias.size * 4
                      + M_pad * N_pad * jnp.dtype(out_dtype).itemsize)

    return pl.pallas_call(
        kernel,
        out_shape=jax.ShapeDtypeStruct((M_pad, N_pad), out_dtype),
        grid_spec=pltpu.PrefetchScalarGridSpec(
            num_scalar_prefetch=0,
            grid=grid,
            in_specs=[
                pl.BlockSpec((1, tm, C), lambda i, j, k: (k, i, 0)),
                pl.BlockSpec((1, C, tn), lambda i, j, k: (k, 0, j)),
                pl.BlockSpec((1, tn), lambda i, j, k: (0, j)),
            ],
            out_specs=pl.BlockSpec((tm, tn), lambda i, j, k: (i, j)),
            scratch_shapes=[pltpu.VMEM((tm, tn), jnp.float32)],
        ),
        compiler_params=pltpu.CompilerParams(
            dimension_semantics=("parallel", "parallel", "arbitrary"),
            vmem_limit_bytes=32 * 1024 * 1024,
        ),
        cost_estimate=pl.CostEstimate(
            flops=flops, transcendentals=0, bytes_accessed=bytes_accessed),
    )(patches, weights, bias)


def conv2d_leaky_nhwc(x, w, b, k, s, *, negative_slope=0.1):
    """x: (N, H, W, C) bf16; w: (C_out, C_in, k, k) OIHW f32; b: (C_out,) f32.
    Conv2d(kernel=k, stride=s, padding=k//2) + LeakyReLU(0.1), NHWC output."""
    N, H, W, C = x.shape
    C_out = w.shape[0]
    p = k // 2
    Ho = (H + 2 * p - k) // s + 1
    Wo = (W + 2 * p - k) // s + 1
    M = N * Ho * Wo

    # k*k shifted (M, C) views of the zero-padded input (no C*k*k im2col).
    xp = jnp.pad(x, ((0, 0), (p, p), (p, p), (0, 0)))
    taps = []
    for di in range(k):
        for dj in range(k):
            v = xp[:, di:di + s * Ho:s, dj:dj + s * Wo:s, :]
            taps.append(v.reshape(M, C))
    patches = jnp.stack(taps, axis=0)                       # (k*k, M, C)

    tm, M_pad = _conv_tiles(M)
    N_pad = _round_up(C_out, LANE)                          # lane-dense output
    patches = jnp.pad(patches, ((0, 0), (0, M_pad - M), (0, 0)))
    patches = patches.astype(jnp.bfloat16)

    # OIHW -> (k*k, C_in, C_out), padded on the output-channel (lane) dim.
    w_taps = jnp.transpose(w, (2, 3, 1, 0)).reshape(k * k, C, C_out)
    w_taps = jnp.pad(w_taps, ((0, 0), (0, 0), (0, N_pad - C_out)))
    w_taps = w_taps.astype(jnp.bfloat16)
    b_pad = jnp.pad(b.astype(jnp.float32),
                    (0, N_pad - C_out)).reshape(1, N_pad)

    out = tap_matmul(patches, w_taps, b_pad, tm=tm,
                     negative_slope=negative_slope)
    return out[:M, :C_out].reshape(N, Ho, Wo, C_out)


# ----------------------------------------------------------------------------
# Pallas kernel 2: lane-dense elementwise max over the k*k shifted pool views.
# ----------------------------------------------------------------------------
def _elementwise_max_kernel(*refs):
    o_ref = refs[-1]
    acc = refs[0][...]
    for r in refs[1:-1]:
        acc = jnp.maximum(acc, r[...])
    o_ref[...] = acc


def _elementwise_max(views):
    """views: list of identically-shaped (R, 128) arrays -> elementwise max."""
    R, L = views[0].shape
    tr = R
    for cand in (512, 256, 128, 64, 32, 16, 8):
        if R % cand == 0:
            tr = cand
            break
    spec = pl.BlockSpec((tr, L), lambda i: (i, 0))
    return pl.pallas_call(
        _elementwise_max_kernel,
        out_shape=jax.ShapeDtypeStruct((R, L), views[0].dtype),
        grid_spec=pltpu.PrefetchScalarGridSpec(
            num_scalar_prefetch=0,
            grid=(R // tr,),
            in_specs=[spec] * len(views),
            out_specs=spec,
        ),
        compiler_params=pltpu.CompilerParams(
            dimension_semantics=("parallel",)),
    )(*views)


def maxpool2d_nhwc(x, k, s):
    """MaxPool2d(kernel_size=k, stride=s), floor mode, no padding, NHWC."""
    N, H, W, C = x.shape
    Ho = (H - k) // s + 1
    Wo = (W - k) // s + 1
    L = N * Ho * Wo * C
    Lp = _round_up(L, SUBLANE * LANE)
    views = []
    for di in range(k):
        for dj in range(k):
            v = x[:, di:di + s * Ho:s, dj:dj + s * Wo:s, :].reshape(-1)
            views.append(jnp.pad(v, (0, Lp - L)).reshape(Lp // LANE, LANE))
    out = _elementwise_max(views)
    return out.reshape(-1)[:L].reshape(N, Ho, Wo, C)


# ----------------------------------------------------------------------------
# Pallas kernel 3: fused AdaptiveAvgPool2d(1) + Flatten + Linear head.
# ----------------------------------------------------------------------------
def _avgpool_fc_kernel(x_ref, p_ref, w_ref, b_ref, o_ref):
    pooled = jnp.dot(p_ref[...], x_ref[...].astype(jnp.float32),
                     preferred_element_type=jnp.float32)       # (N, C)
    o_ref[...] = jnp.dot(pooled, w_ref[...],
                         preferred_element_type=jnp.float32) + b_ref[...]


def avgpool_fc(x, w_fc, b_fc):
    """x: (N, H, W, C) bf16; w_fc: (n_classes, C); b_fc: (n_classes,)."""
    N, H, W, C = x.shape
    n_classes = w_fc.shape[0]
    HW = H * W
    N_pad = _round_up(n_classes, LANE)

    x2 = x.reshape(N * HW, C)
    # Pooling matrix folds the 1/(H*W) mean into a matmul on the MXU.
    pool_mat = jnp.repeat(jnp.eye(N, dtype=jnp.float32), HW, axis=1) / float(HW)
    w_pad = jnp.pad(w_fc.astype(jnp.float32).T,
                    ((0, 0), (0, N_pad - n_classes)))           # (C, N_pad)
    b_pad = jnp.pad(b_fc.astype(jnp.float32),
                    (0, N_pad - n_classes)).reshape(1, N_pad)

    out = pl.pallas_call(
        _avgpool_fc_kernel,
        out_shape=jax.ShapeDtypeStruct((N, N_pad), jnp.float32),
        in_specs=[pl.BlockSpec(memory_space=pltpu.MemorySpace.VMEM)] * 4,
        out_specs=pl.BlockSpec(memory_space=pltpu.MemorySpace.VMEM),
    )(x2, pool_mat, w_pad, b_pad)
    return out[:, :n_classes]


# ----------------------------------------------------------------------------
# Darknet forward (channels-last internally; NCHW at the boundary like PyTorch)
# ----------------------------------------------------------------------------
def darknet_forward(x_nchw, conv_params, w_fc, b_fc, *, cnn_blocks):
    x = jnp.transpose(x_nchw, (0, 2, 3, 1)).astype(jnp.bfloat16)   # NHWC, bf16
    for blk, blk_params in zip(cnn_blocks, conv_params):
        for (w, b), k, s in zip(blk_params, blk["kernels"], blk["strides"]):
            x = conv2d_leaky_nhwc(x, w, b, k, s)
        if blk["pool"]:
            x = maxpool2d_nhwc(x, blk["pool"][0], blk["pool"][1])
    return avgpool_fc(x, w_fc, b_fc)


# Pure-JAX f32 reference (correctness check only).
def darknet_ref(x, conv_params, cnn_blocks, w_fc, b_fc):
    for blk, blk_params in zip(cnn_blocks, conv_params):
        for (w, b), k, s in zip(blk_params, blk["kernels"], blk["strides"]):
            p = k // 2
            x = jax.lax.conv_general_dilated(
                x, w, window_strides=(s, s), padding=[(p, p), (p, p)],
                dimension_numbers=("NCHW", "OIHW", "NCHW"))
            x = x + b.reshape(1, -1, 1, 1)
            x = jnp.where(x >= 0, x, 0.1 * x)
        if blk["pool"]:
            pk, ps = blk["pool"]
            x = jax.lax.reduce_window(x, -jnp.inf, jax.lax.max,
                                      (1, 1, pk, pk), (1, 1, ps, ps), "VALID")
    x = jnp.mean(x, axis=(2, 3))
    return x @ w_fc.T + b_fc


# ----------------------------------------------------------------------------
# Deterministic parameter init + driver
# ----------------------------------------------------------------------------
def init_params(key, cnn_blocks, n_classes):
    conv_params = []
    for blk in cnn_blocks:
        in_c = blk["in_c"]
        blk_params = []
        for c_out, k in zip(blk["channels"], blk["kernels"]):
            key, wk = jax.random.split(key)
            fan_out = c_out * k * k
            std = (2.0 / fan_out) ** 0.5  # kaiming-normal-like scale
            w = std * jax.random.normal(wk, (c_out, in_c, k, k), jnp.float32)
            b = jnp.zeros((c_out,), jnp.float32)
            blk_params.append((w, b))
            in_c = c_out
        conv_params.append(blk_params)
    key, wk = jax.random.split(key)
    c_last = cnn_blocks[-1]["channels"][-1]
    w_fc = (1.0 / c_last ** 0.5) * jax.random.normal(
        wk, (n_classes, c_last), jnp.float32)
    b_fc = jnp.zeros((n_classes,), jnp.float32)
    return conv_params, w_fc, b_fc


if __name__ == "__main__":
    cnn_blocks = [
        dict(in_c=4, channels=[8], kernels=[3], strides=[1], pool=(2, 2)),
        dict(in_c=8, channels=[16, 16], kernels=[3, 1], strides=[1, 1],
             pool=(2, 2)),
    ]
    n_classes = 10

    key = jax.random.PRNGKey(0)
    key, xk = jax.random.split(key)
    x = jax.random.normal(xk, (2, 4, 16, 16), jnp.float32)  # NCHW

    conv_params, w_fc, b_fc = init_params(key, cnn_blocks, n_classes)

    fwd = jax.jit(functools.partial(darknet_forward, cnn_blocks=cnn_blocks))
    logits = fwd(x, conv_params, w_fc, b_fc)
    logits = jax.block_until_ready(logits)

    ref = darknet_ref(x, conv_params, cnn_blocks, w_fc, b_fc)
    assert logits.shape == (2, n_classes)
    max_err = float(jnp.max(jnp.abs(logits - ref)))
    # bf16 MXU inputs / bf16 inter-layer activations -> relaxed tolerance.
    assert jnp.allclose(logits, ref, rtol=5e-2, atol=5e-2), (
        f"Pallas output mismatch vs JAX reference (max abs err {max_err:.4f})")

    print("KERNEL_OK")
</pallas_src>

<mosaic_0001>
module attributes {stable_mosaic.version = 11 : i64} {
  func.func @_tap_matmul_kernel(%arg0: i32, %arg1: i32, %arg2: i32, %arg3: memref<1x256x4xbf16, #tpu.memory_space<vmem>>, %arg4: memref<1x4x128xbf16, #tpu.memory_space<vmem>>, %arg5: memref<1x128xf32, #tpu.memory_space<vmem>>, %arg6: memref<256x128xbf16, #tpu.memory_space<vmem>>, %arg7: memref<256x128xf32, #tpu.memory_space<vmem>>) attributes {dimension_semantics = [#tpu.dimension_semantics<parallel>, #tpu.dimension_semantics<parallel>, #tpu.dimension_semantics<arbitrary>], iteration_bounds = array<i64: 2, 1, 9>, scalar_prefetch = 0 : i64, scratch_operands = 1 : i64, tpu.core_type = #tpu.core_type<tc>, window_params = [{transform_indices = @transform_0, window_bounds = array<i64: 1, 256, 4>}, {transform_indices = @transform_1, window_bounds = array<i64: 1, 4, 128>}, {transform_indices = @transform_2, window_bounds = array<i64: 1, 128>}, {transform_indices = @transform_3, window_bounds = array<i64: 256, 128>}]} {
    %c0_i32 = arith.constant 0 : i32
    %0 = arith.cmpi eq, %arg2, %c0_i32 : i32
    %1 = arith.extui %0 : i1 to i32
    %c0_i32_0 = arith.constant 0 : i32
    %2 = arith.cmpi ne, %1, %c0_i32_0 : i32
    scf.if %2 {
      %cst_11 = arith.constant 0.000000e+00 : f32
      %14 = vector.broadcast %cst_11 : f32 to vector<256x128xf32>
      %c0_12 = arith.constant 0 : index
      %c0_13 = arith.constant 0 : index
      %15 = vector.load %arg7[%c0_12, %c0_13] : memref<256x128xf32, #tpu.memory_space<vmem>>, vector<256x128xf32>
      tpu.vector_store %arg7[%c0_12, %c0_13], %14 {strides = array<i32>} : memref<256x128xf32, #tpu.memory_space<vmem>>, vector<256x128xf32>,
    } else {
    }
    %c0 = arith.constant 0 : index
    %c0_1 = arith.constant 0 : index
    %3 = vector.load %arg7[%c0, %c0_1] : memref<256x128xf32, #tpu.memory_space<vmem>>, vector<256x128xf32>
    %c0_2 = arith.constant 0 : index
    %c0_3 = arith.constant 0 : index
    %c0_4 = arith.constant 0 : index
    %4 = vector.load %arg3[%c0_2, %c0_3, %c0_4] : memref<1x256x4xbf16, #tpu.memory_space<vmem>>, vector<1x256x4xbf16>
    %5 = vector.shape_cast %4 : vector<1x256x4xbf16> to vector<256x4xbf16>
    %c0_5 = arith.constant 0 : index
    %c0_6 = arith.constant 0 : index
    %c0_7 = arith.constant 0 : index
    %6 = vector.load %arg4[%c0_5, %c0_6, %c0_7] : memref<1x4x128xbf16, #tpu.memory_space<vmem>>, vector<1x4x128xbf16>
    %7 = vector.shape_cast %6 : vector<1x4x128xbf16> to vector<4x128xbf16>
    %cst = arith.constant dense<0.000000e+00> : vector<256x128xf32>
    %8 = tpu.matmul %5, %7, %cst {dimension_numbers = #tpu.dot_dimension_numbers<[1], [0], [0], [1], [0, 0, 1, 1], [], []>} : vector<256x4xbf16>, vector<4x128xbf16>, vector<256x128xf32> -> vector<256x128xf32>
    %9 = arith.addf %3, %8 : vector<256x128xf32>
    %c0_8 = arith.constant 0 : index
    %c0_9 = arith.constant 0 : index
    %10 = vector.load %arg7[%c0_8, %c0_9] : memref<256x128xf32, #tpu.memory_space<vmem>>, vector<256x128xf32>
    tpu.vector_store %arg7[%c0_8, %c0_9], %9 {strides = array<i32>} : memref<256x128xf32, #tpu.memory_space<vmem>>, vector<256x128xf32>,
    %c8_i32 = arith.constant 8 : i32
    %11 = arith.cmpi eq, %arg2, %c8_i32 : i32
    %12 = arith.extui %11 : i1 to i32
    %c0_i32_10 = arith.constant 0 : i32
    %13 = arith.cmpi ne, %12, %c0_i32_10 : i32
    scf.if %13 {
      %c0_11 = arith.constant 0 : index
      %c0_12 = arith.constant 0 : index
      %14 = vector.load %arg7[%c0_11, %c0_12] : memref<256x128xf32, #tpu.memory_space<vmem>>, vector<256x128xf32>
      %c0_13 = arith.constant 0 : index
      %c0_14 = arith.constant 0 : index
      %15 = vector.load %arg5[%c0_13, %c0_14] : memref<1x128xf32, #tpu.memory_space<vmem>>, vector<1x128xf32>
      %16 = vector.broadcast %15 : vector<1x128xf32> to vector<256x128xf32>
      %17 = arith.addf %14, %16 : vector<256x128xf32>
      %cst_15 = arith.constant 0.000000e+00 : f32
      %18 = vector.broadcast %cst_15 : f32 to vector<256x128xf32>
      %19 = arith.cmpf oge, %17, %18 : vector<256x128xf32>
      %cst_16 = arith.constant 1.000000e-01 : f32
      %20 = vector.broadcast %cst_16 : f32 to vector<256x128xf32>
      %21 = arith.mulf %20, %17 : vector<256x128xf32>
      %22 = arith.select %19, %17, %21 : vector<256x128xi1>, vector<256x128xf32>
      %23 = arith.truncf %22 : vector<256x128xf32> to vector<256x128xbf16>
      %c0_17 = arith.constant 0 : index
      %c0_18 = arith.constant 0 : index
      %24 = vector.load %arg6[%c0_17, %c0_18] : memref<256x128xbf16, #tpu.memory_space<vmem>>, vector<256x128xbf16>
      tpu.vector_store %arg6[%c0_17, %c0_18], %23 {strides = array<i32>} : memref<256x128xbf16, #tpu.memory_space<vmem>>, vector<256x128xbf16>,
    } else {
    }
    return
  }
  func.func @transform_0(%arg0: i32, %arg1: i32, %arg2: i32) -> (i32, i32, i32) {
    %c0_i32 = arith.constant 0 : i32
    %c0_i32_0 = arith.constant 0 : i32
    return %arg2, %arg0, %c0_i32 : i32, i32, i32
  }
  func.func @transform_1(%arg0: i32, %arg1: i32, %arg2: i32) -> (i32, i32, i32) {
    %c0_i32 = arith.constant 0 : i32
    %c0_i32_0 = arith.constant 0 : i32
    return %arg2, %c0_i32, %arg1 : i32, i32, i32
  }
  func.func @transform_2(%arg0: i32, %arg1: i32, %arg2: i32) -> (i32, i32) {
    %c0_i32 = arith.constant 0 : i32
    %c0_i32_0 = arith.constant 0 : i32
    return %c0_i32, %arg1 : i32, i32
  }
  func.func @transform_3(%arg0: i32, %arg1: i32, %arg2: i32) -> (i32, i32) {
    %c0_i32 = arith.constant 0 : i32
    return %arg0, %arg1 : i32, i32
  }
}

module attributes {stable_mosaic.version = 11 : i64} {
  func.func @_elementwise_max_kernel(%arg0: i32, %arg1: memref<8x128xbf16, #tpu.memory_space<vmem>>, %arg2: memref<8x128xbf16, #tpu.memory_space<vmem>>, %arg3: memref<8x128xbf16, #tpu.memory_space<vmem>>, %arg4: memref<8x128xbf16, #tpu.memory_space<vmem>>, %arg5: memref<8x128xbf16, #tpu.memory_space<vmem>>) attributes {dimension_semantics = [#tpu.dimension_semantics<parallel>], iteration_bounds = array<i64: 1>, scalar_prefetch = 0 : i64, scratch_operands = 0 : i64, tpu.core_type = #tpu.core_type<tc>, window_params = [{transform_indices = @transform_0, window_bounds = array<i64: 8, 128>}, {transform_indices = @transform_1, window_bounds = array<i64: 8, 128>}, {transform_indices = @transform_2, window_bounds = array<i64: 8, 128>}, {transform_indices = @transform_3, window_bounds = array<i64: 8, 128>}, {transform_indices = @transform_4, window_bounds = array<i64: 8, 128>}]} {
    %c0 = arith.constant 0 : index
    %c0_0 = arith.constant 0 : index
    %0 = vector.load %arg1[%c0, %c0_0] : memref<8x128xbf16, #tpu.memory_space<vmem>>, vector<8x128xbf16>
    %c0_1 = arith.constant 0 : index
    %c0_2 = arith.constant 0 : index
    %1 = vector.load %arg2[%c0_1, %c0_2] : memref<8x128xbf16, #tpu.memory_space<vmem>>, vector<8x128xbf16>
    %2 = arith.maximumf %0, %1 : vector<8x128xbf16>
    %c0_3 = arith.constant 0 : index
    %c0_4 = arith.constant 0 : index
    %3 = vector.load %arg3[%c0_3, %c0_4] : memref<8x128xbf16, #tpu.memory_space<vmem>>, vector<8x128xbf16>
    %4 = arith.maximumf %2, %3 : vector<8x128xbf16>
    %c0_5 = arith.constant 0 : index
    %c0_6 = arith.constant 0 : index
    %5 = vector.load %arg4[%c0_5, %c0_6] : memref<8x128xbf16, #tpu.memory_space<vmem>>, vector<8x128xbf16>
    %6 = arith.maximumf %4, %5 : vector<8x128xbf16>
    %c0_7 = arith.constant 0 : index
    %c0_8 = arith.constant 0 : index
    %7 = vector.load %arg5[%c0_7, %c0_8] : memref<8x128xbf16, #tpu.memory_space<vmem>>, vector<8x128xbf16>
    tpu.vector_store %arg5[%c0_7, %c0_8], %6 {strides = array<i32>} : memref<8x128xbf16, #tpu.memory_space<vmem>>, vector<8x128xbf16>,
    return
  }
  func.func @transform_0(%arg0: i32) -> (i32, i32) {
    %c0_i32 = arith.constant 0 : i32
    %c0_i32_0 = arith.constant 0 : i32
    return %arg0, %c0_i32 : i32, i32
  }
  func.func @transform_1(%arg0: i32) -> (i32, i32) {
    %c0_i32 = arith.constant 0 : i32
    %c0_i32_0 = arith.constant 0 : i32
    return %arg0, %c0_i32 : i32, i32
  }
  func.func @transform_2(%arg0: i32) -> (i32, i32) {
    %c0_i32 = arith.constant 0 : i32
    %c0_i32_0 = arith.constant 0 : i32
    return %arg0, %c0_i32 : i32, i32
  }
  func.func @transform_3(%arg0: i32) -> (i32, i32) {
    %c0_i32 = arith.constant 0 : i32
    %c0_i32_0 = arith.constant 0 : i32
    return %arg0, %c0_i32 : i32, i32
  }
  func.func @transform_4(%arg0: i32) -> (i32, i32) {
    %c0_i32 = arith.constant 0 : i32
    %c0_i32_0 = arith.constant 0 : i32
    return %arg0, %c0_i32 : i32, i32
  }
}

module attributes {stable_mosaic.version = 11 : i64} {
  func.func @_tap_matmul_kernel(%arg0: i32, %arg1: i32, %arg2: i32, %arg3: memref<1x64x8xbf16, #tpu.memory_space<vmem>>, %arg4: memref<1x8x128xbf16, #tpu.memory_space<vmem>>, %arg5: memref<1x128xf32, #tpu.memory_space<vmem>>, %arg6: memref<64x128xbf16, #tpu.memory_space<vmem>>, %arg7: memref<64x128xf32, #tpu.memory_space<vmem>>) attributes {dimension_semantics = [#tpu.dimension_semantics<parallel>, #tpu.dimension_semantics<parallel>, #tpu.dimension_semantics<arbitrary>], iteration_bounds = array<i64: 2, 1, 9>, scalar_prefetch = 0 : i64, scratch_operands = 1 : i64, tpu.core_type = #tpu.core_type<tc>, window_params = [{transform_indices = @transform_0, window_bounds = array<i64: 1, 64, 8>}, {transform_indices = @transform_1, window_bounds = array<i64: 1, 8, 128>}, {transform_indices = @transform_2, window_bounds = array<i64: 1, 128>}, {transform_indices = @transform_3, window_bounds = array<i64: 64, 128>}]} {
    %c0_i32 = arith.constant 0 : i32
    %0 = arith.cmpi eq, %arg2, %c0_i32 : i32
    %1 = arith.extui %0 : i1 to i32
    %c0_i32_0 = arith.constant 0 : i32
    %2 = arith.cmpi ne, %1, %c0_i32_0 : i32
    scf.if %2 {
      %cst_11 = arith.constant 0.000000e+00 : f32
      %14 = vector.broadcast %cst_11 : f32 to vector<64x128xf32>
      %c0_12 = arith.constant 0 : index
      %c0_13 = arith.constant 0 : index
      %15 = vector.load %arg7[%c0_12, %c0_13] : memref<64x128xf32, #tpu.memory_space<vmem>>, vector<64x128xf32>
      tpu.vector_store %arg7[%c0_12, %c0_13], %14 {strides = array<i32>} : memref<64x128xf32, #tpu.memory_space<vmem>>, vector<64x128xf32>,
    } else {
    }
    %c0 = arith.constant 0 : index
    %c0_1 = arith.constant 0 : index
    %3 = vector.load %arg7[%c0, %c0_1] : memref<64x128xf32, #tpu.memory_space<vmem>>, vector<64x128xf32>
    %c0_2 = arith.constant 0 : index
    %c0_3 = arith.constant 0 : index
    %c0_4 = arith.constant 0 : index
    %4 = vector.load %arg3[%c0_2, %c0_3, %c0_4] : memref<1x64x8xbf16, #tpu.memory_space<vmem>>, vector<1x64x8xbf16>
    %5 = vector.shape_cast %4 : vector<1x64x8xbf16> to vector<64x8xbf16>
    %c0_5 = arith.constant 0 : index
    %c0_6 = arith.constant 0 : index
    %c0_7 = arith.constant 0 : index
    %6 = vector.load %arg4[%c0_5, %c0_6, %c0_7] : memref<1x8x128xbf16, #tpu.memory_space<vmem>>, vector<1x8x128xbf16>
    %7 = vector.shape_cast %6 : vector<1x8x128xbf16> to vector<8x128xbf16>
    %cst = arith.constant dense<0.000000e+00> : vector<64x128xf32>
    %8 = tpu.matmul %5, %7, %cst {dimension_numbers = #tpu.dot_dimension_numbers<[1], [0], [0], [1], [0, 0, 1, 1], [], []>} : vector<64x8xbf16>, vector<8x128xbf16>, vector<64x128xf32> -> vector<64x128xf32>
    %9 = arith.addf %3, %8 : vector<64x128xf32>
    %c0_8 = arith.constant 0 : index
    %c0_9 = arith.constant 0 : index
    %10 = vector.load %arg7[%c0_8, %c0_9] : memref<64x128xf32, #tpu.memory_space<vmem>>, vector<64x128xf32>
    tpu.vector_store %arg7[%c0_8, %c0_9], %9 {strides = array<i32>} : memref<64x128xf32, #tpu.memory_space<vmem>>, vector<64x128xf32>,
    %c8_i32 = arith.constant 8 : i32
    %11 = arith.cmpi eq, %arg2, %c8_i32 : i32
    %12 = arith.extui %11 : i1 to i32
    %c0_i32_10 = arith.constant 0 : i32
    %13 = arith.cmpi ne, %12, %c0_i32_10 : i32
    scf.if %13 {
      %c0_11 = arith.constant 0 : index
      %c0_12 = arith.constant 0 : index
      %14 = vector.load %arg7[%c0_11, %c0_12] : memref<64x128xf32, #tpu.memory_space<vmem>>, vector<64x128xf32>
      %c0_13 = arith.constant 0 : index
      %c0_14 = arith.constant 0 : index
      %15 = vector.load %arg5[%c0_13, %c0_14] : memref<1x128xf32, #tpu.memory_space<vmem>>, vector<1x128xf32>
      %16 = vector.broadcast %15 : vector<1x128xf32> to vector<64x128xf32>
      %17 = arith.addf %14, %16 : vector<64x128xf32>
      %cst_15 = arith.constant 0.000000e+00 : f32
      %18 = vector.broadcast %cst_15 : f32 to vector<64x128xf32>
      %19 = arith.cmpf oge, %17, %18 : vector<64x128xf32>
      %cst_16 = arith.constant 1.000000e-01 : f32
      %20 = vector.broadcast %cst_16 : f32 to vector<64x128xf32>
      %21 = arith.mulf %20, %17 : vector<64x128xf32>
      %22 = arith.select %19, %17, %21 : vector<64x128xi1>, vector<64x128xf32>
      %23 = arith.truncf %22 : vector<64x128xf32> to vector<64x128xbf16>
      %c0_17 = arith.constant 0 : index
      %c0_18 = arith.constant 0 : index
      %24 = vector.load %arg6[%c0_17, %c0_18] : memref<64x128xbf16, #tpu.memory_space<vmem>>, vector<64x128xbf16>
      tpu.vector_store %arg6[%c0_17, %c0_18], %23 {strides = array<i32>} : memref<64x128xbf16, #tpu.memory_space<vmem>>, vector<64x128xbf16>,
    } else {
    }
    return
  }
  func.func @transform_0(%arg0: i32, %arg1: i32, %arg2: i32) -> (i32, i32, i32) {
    %c0_i32 = arith.constant 0 : i32
    %c0_i32_0 = arith.constant 0 : i32
    return %arg2, %arg0, %c0_i32 : i32, i32, i32
  }
  func.func @transform_1(%arg0: i32, %arg1: i32, %arg2: i32) -> (i32, i32, i32) {
    %c0_i32 = arith.constant 0 : i32
    %c0_i32_0 = arith.constant 0 : i32
    return %arg2, %c0_i32, %arg1 : i32, i32, i32
  }
  func.func @transform_2(%arg0: i32, %arg1: i32, %arg2: i32) -> (i32, i32) {
    %c0_i32 = arith.constant 0 : i32
    %c0_i32_0 = arith.constant 0 : i32
    return %c0_i32, %arg1 : i32, i32
  }
  func.func @transform_3(%arg0: i32, %arg1: i32, %arg2: i32) -> (i32, i32) {
    %c0_i32 = arith.constant 0 : i32
    return %arg0, %arg1 : i32, i32
  }
}

module attributes {stable_mosaic.version = 11 : i64} {
  func.func @_tap_matmul_kernel(%arg0: i32, %arg1: i32, %arg2: i32, %arg3: memref<1x64x16xbf16, #tpu.memory_space<vmem>>, %arg4: memref<1x16x128xbf16, #tpu.memory_space<vmem>>, %arg5: memref<1x128xf32, #tpu.memory_space<vmem>>, %arg6: memref<64x128xbf16, #tpu.memory_space<vmem>>, %arg7: memref<64x128xf32, #tpu.memory_space<vmem>>) attributes {dimension_semantics = [#tpu.dimension_semantics<parallel>, #tpu.dimension_semantics<parallel>, #tpu.dimension_semantics<arbitrary>], iteration_bounds = array<i64: 2, 1, 1>, scalar_prefetch = 0 : i64, scratch_operands = 1 : i64, tpu.core_type = #tpu.core_type<tc>, window_params = [{transform_indices = @transform_0, window_bounds = array<i64: 1, 64, 16>}, {transform_indices = @transform_1, window_bounds = array<i64: 1, 16, 128>}, {transform_indices = @transform_2, window_bounds = array<i64: 1, 128>}, {transform_indices = @transform_3, window_bounds = array<i64: 64, 128>}]} {
    %c0_i32 = arith.constant 0 : i32
    %0 = arith.cmpi eq, %arg2, %c0_i32 : i32
    %1 = arith.extui %0 : i1 to i32
    %c0_i32_0 = arith.constant 0 : i32
    %2 = arith.cmpi ne, %1, %c0_i32_0 : i32
    scf.if %2 {
      %cst_12 = arith.constant 0.000000e+00 : f32
      %14 = vector.broadcast %cst_12 : f32 to vector<64x128xf32>
      %c0_13 = arith.constant 0 : index
      %c0_14 = arith.constant 0 : index
      %15 = vector.load %arg7[%c0_13, %c0_14] : memref<64x128xf32, #tpu.memory_space<vmem>>, vector<64x128xf32>
      tpu.vector_store %arg7[%c0_13, %c0_14], %14 {strides = array<i32>} : memref<64x128xf32, #tpu.memory_space<vmem>>, vector<64x128xf32>,
    } else {
    }
    %c0 = arith.constant 0 : index
    %c0_1 = arith.constant 0 : index
    %3 = vector.load %arg7[%c0, %c0_1] : memref<64x128xf32, #tpu.memory_space<vmem>>, vector<64x128xf32>
    %c0_2 = arith.constant 0 : index
    %c0_3 = arith.constant 0 : index
    %c0_4 = arith.constant 0 : index
    %4 = vector.load %arg3[%c0_2, %c0_3, %c0_4] : memref<1x64x16xbf16, #tpu.memory_space<vmem>>, vector<1x64x16xbf16>
    %5 = vector.shape_cast %4 : vector<1x64x16xbf16> to vector<64x16xbf16>
    %c0_5 = arith.constant 0 : index
    %c0_6 = arith.constant 0 : index
    %c0_7 = arith.constant 0 : index
    %6 = vector.load %arg4[%c0_5, %c0_6, %c0_7] : memref<1x16x128xbf16, #tpu.memory_space<vmem>>, vector<1x16x128xbf16>
    %7 = vector.shape_cast %6 : vector<1x16x128xbf16> to vector<16x128xbf16>
    %cst = arith.constant dense<0.000000e+00> : vector<64x128xf32>
    %8 = tpu.matmul %5, %7, %cst {dimension_numbers = #tpu.dot_dimension_numbers<[1], [0], [0], [1], [0, 0, 1, 1], [], []>} : vector<64x16xbf16>, vector<16x128xbf16>, vector<64x128xf32> -> vector<64x128xf32>
    %9 = arith.addf %3, %8 : vector<64x128xf32>
    %c0_8 = arith.constant 0 : index
    %c0_9 = arith.constant 0 : index
    %10 = vector.load %arg7[%c0_8, %c0_9] : memref<64x128xf32, #tpu.memory_space<vmem>>, vector<64x128xf32>
    tpu.vector_store %arg7[%c0_8, %c0_9], %9 {strides = array<i32>} : memref<64x128xf32, #tpu.memory_space<vmem>>, vector<64x128xf32>,
    %c0_i32_10 = arith.constant 0 : i32
    %11 = arith.cmpi eq, %arg2, %c0_i32_10 : i32
    %12 = arith.extui %11 : i1 to i32
    %c0_i32_11 = arith.constant 0 : i32
    %13 = arith.cmpi ne, %12, %c0_i32_11 : i32
    scf.if %13 {
      %c0_12 = arith.constant 0 : index
      %c0_13 = arith.constant 0 : index
      %14 = vector.load %arg7[%c0_12, %c0_13] : memref<64x128xf32, #tpu.memory_space<vmem>>, vector<64x128xf32>
      %c0_14 = arith.constant 0 : index
      %c0_15 = arith.constant 0 : index
      %15 = vector.load %arg5[%c0_14, %c0_15] : memref<1x128xf32, #tpu.memory_space<vmem>>, vector<1x128xf32>
      %16 = vector.broadcast %15 : vector<1x128xf32> to vector<64x128xf32>
      %17 = arith.addf %14, %16 : vector<64x128xf32>
      %cst_16 = arith.constant 0.000000e+00 : f32
      %18 = vector.broadcast %cst_16 : f32 to vector<64x128xf32>
      %19 = arith.cmpf oge, %17, %18 : vector<64x128xf32>
      %cst_17 = arith.constant 1.000000e-01 : f32
      %20 = vector.broadcast %cst_17 : f32 to vector<64x128xf32>
      %21 = arith.mulf %20, %17 : vector<64x128xf32>
      %22 = arith.select %19, %17, %21 : vector<64x128xi1>, vector<64x128xf32>
      %23 = arith.truncf %22 : vector<64x128xf32> to vector<64x128xbf16>
      %c0_18 = arith.constant 0 : index
      %c0_19 = arith.constant 0 : index
      %24 = vector.load %arg6[%c0_18, %c0_19] : memref<64x128xbf16, #tpu.memory_space<vmem>>, vector<64x128xbf16>
      tpu.vector_store %arg6[%c0_18, %c0_19], %23 {strides = array<i32>} : memref<64x128xbf16, #tpu.memory_space<vmem>>, vector<64x128xbf16>,
    } else {
    }
    return
  }
  func.func @transform_0(%arg0: i32, %arg1: i32, %arg2: i32) -> (i32, i32, i32) {
    %c0_i32 = arith.constant 0 : i32
    %c0_i32_0 = arith.constant 0 : i32
    return %arg2, %arg0, %c0_i32 : i32, i32, i32
  }
  func.func @transform_1(%arg0: i32, %arg1: i32, %arg2: i32) -> (i32, i32, i32) {
    %c0_i32 = arith.constant 0 : i32
    %c0_i32_0 = arith.constant 0 : i32
    return %arg2, %c0_i32, %arg1 : i32, i32, i32
  }
  func.func @transform_2(%arg0: i32, %arg1: i32, %arg2: i32) -> (i32, i32) {
    %c0_i32 = arith.constant 0 : i32
    %c0_i32_0 = arith.constant 0 : i32
    return %c0_i32, %arg1 : i32, i32
  }
  func.func @transform_3(%arg0: i32, %arg1: i32, %arg2: i32) -> (i32, i32) {
    %c0_i32 = arith.constant 0 : i32
    return %arg0, %arg1 : i32, i32
  }
}

module attributes {stable_mosaic.version = 11 : i64} {
  func.func @_avgpool_fc_kernel(%arg0: memref<32x16xbf16, #tpu.memory_space<vmem>>, %arg1: memref<2x32xf32, #tpu.memory_space<vmem>>, %arg2: memref<16x128xf32, #tpu.memory_space<vmem>>, %arg3: memref<1x128xf32, #tpu.memory_space<vmem>>, %arg4: memref<2x128xf32, #tpu.memory_space<vmem>>) attributes {dimension_semantics = [], scalar_prefetch = 0 : i64, scratch_operands = 0 : i64, tpu.core_type = #tpu.core_type<tc>} {
    %c0 = arith.constant 0 : index
    %c0_0 = arith.constant 0 : index
    %0 = vector.load %arg1[%c0, %c0_0] : memref<2x32xf32, #tpu.memory_space<vmem>>, vector<2x32xf32>
    %c0_1 = arith.constant 0 : index
    %c0_2 = arith.constant 0 : index
    %1 = vector.load %arg0[%c0_1, %c0_2] : memref<32x16xbf16, #tpu.memory_space<vmem>>, vector<32x16xbf16>
    %2 = arith.extf %1 : vector<32x16xbf16> to vector<32x16xf32>
    %cst = arith.constant dense<0.000000e+00> : vector<2x16xf32>
    %3 = tpu.matmul %0, %2, %cst {dimension_numbers = #tpu.dot_dimension_numbers<[1], [0], [0], [1], [0, 0, 1, 1], [], []>} : vector<2x32xf32>, vector<32x16xf32>, vector<2x16xf32> -> vector<2x16xf32>
    %c0_3 = arith.constant 0 : index
    %c0_4 = arith.constant 0 : index
    %4 = vector.load %arg2[%c0_3, %c0_4] : memref<16x128xf32, #tpu.memory_space<vmem>>, vector<16x128xf32>
    %cst_5 = arith.constant dense<0.000000e+00> : vector<2x128xf32>
    %5 = tpu.matmul %3, %4, %cst_5 {dimension_numbers = #tpu.dot_dimension_numbers<[1], [0], [0], [1], [0, 0, 1, 1], [], []>} : vector<2x16xf32>, vector<16x128xf32>, vector<2x128xf32> -> vector<2x128xf32>
    %c0_6 = arith.constant 0 : index
    %c0_7 = arith.constant 0 : index
    %6 = vector.load %arg3[%c0_6, %c0_7] : memref<1x128xf32, #tpu.memory_space<vmem>>, vector<1x128xf32>
    %7 = vector.broadcast %6 : vector<1x128xf32> to vector<2x128xf32>
    %8 = arith.addf %5, %7 : vector<2x128xf32>
    %c0_8 = arith.constant 0 : index
    %c0_9 = arith.constant 0 : index
    %9 = vector.load %arg4[%c0_8, %c0_9] : memref<2x128xf32, #tpu.memory_space<vmem>>, vector<2x128xf32>
    tpu.vector_store %arg4[%c0_8, %c0_9], %8 {strides = array<i32>} : memref<2x128xf32, #tpu.memory_space<vmem>>, vector<2x128xf32>,
    return
  }
}

</mosaic_0001>

<llo_original>
// kernel: darknet_forward.7
$region0: #{darknet_forward.7}
  #allocation0 [shape = 'u32[]', space=smem, size = 0x4, offset = 0x4, fixed_abs, tag = 'smem constant byte address 0x4 - core index']
  #allocation1 [shape = 'u32[144,128]{1,0:T(1,128)}', space=vmem, size = 0x12000, scoped, tag = 'internal scratch']
  %s0 = inlined_call_operand.vmem [shape: bf16[8,128], index: 0, kind: input, shape index: {}]
  %s1 = inlined_call_operand.vmem [shape: bf16[8,128], index: 1, kind: input, shape index: {}]
  %s2 = inlined_call_operand.vmem [shape: bf16[8,128], index: 2, kind: input, shape index: {}]
  %s3 = inlined_call_operand.vmem [shape: bf16[8,128], index: 3, kind: input, shape index: {}]
  %s4 = inlined_call_operand.vmem [shape: bf16[8,128], index: 4, kind: output, shape index: {}]
  %s5 = sld [smem:[#allocation0]]
  $region26: #{darknet_forward.7} parent=0
    _
  %s7 = ssub.s32 1, %s5
  %s8 = scalar_select 0, %s7, %s5
  // Predicated region
  $region2: #{darknet_forward.7} parent=0 // pred_check
    _
  $region3: #{darknet_forward.7} parent=0 // pred_check_branch
    %10 = sbr.rel (0) target = $region5
  $region4: #{darknet_forward.7} parent=0 // pred_region
    _
  $region5: #{darknet_forward.7} parent=0 // pred_fallthru
    _
  // Predicated region
  $region6: #{darknet_forward.7} parent=0 // pred_check
    _
  $region7: #{darknet_forward.7} parent=0 // pred_check_branch
    %12 = sbr.rel (0) target = $region9
  $region8: #{darknet_forward.7} parent=0 // pred_region
    _
  $region9: #{darknet_forward.7} parent=0 // pred_fallthru
    _
  // Predicated region
  $region10: #{darknet_forward.7} parent=0 // pred_check
    _
  $region11: #{darknet_forward.7} parent=0 // pred_check_branch
    %14 = sbr.rel (0) target = $region13
  $region12: #{darknet_forward.7} parent=0 // pred_region
    _
  $region13: #{darknet_forward.7} parent=0 // pred_fallthru
    _
  // Predicated region
  $region14: #{darknet_forward.7} parent=0 // pred_check
    _
  $region15: #{darknet_forward.7} parent=0 // pred_check_branch
    %16 = sbr.rel (0) target = $region17
  $region16: #{darknet_forward.7} parent=0 // pred_region
    _
  $region17: #{darknet_forward.7} parent=0 // pred_fallthru
    _
  %v17 = vld [vmem:[%s0] sm:$0xf]
  %v18 = vld [vmem:[%s1] sm:$0xf]
  %v19 = vmax.bf16 %v17, %v18
  %v20 = vld [vmem:[%s2] sm:$0xf]
  %v21 = vmax.bf16 %v19, %v20
  %v22 = vld [vmem:[%s3] sm:$0xf]
  %v23 = vmax.bf16 %v21, %v22
  %24 = vst [vmem:[%s4] sm:$0xf] %v23
  // Predicated region
  $region18: #{darknet_forward.7} parent=0 // pred_check
    _
  $region19: #{darknet_forward.7} parent=0 // pred_check_branch
    %26 = sbr.rel (0) target = $region21
  $region20: #{darknet_forward.7} parent=0 // pred_region
    _
  $region21: #{darknet_forward.7} parent=0 // pred_fallthru
    _
  // Predicated region
  $region22: #{darknet_forward.7} parent=0 // pred_check
    _
  $region23: #{darknet_forward.7} parent=0 // pred_check_branch
    %28 = sbr.rel (0) target = $region25
  $region24: #{darknet_forward.7} parent=0 // pred_region
    _
  $region25: #{darknet_forward.7} parent=0 // pred_fallthru
    _

// kernel: darknet_forward.6
$region0: #{darknet_forward.6}
  #allocation0 [shape = 'u32[]', space=smem, size = 0x4, offset = 0x4, fixed_abs, tag = 'smem constant byte address 0x4 - core index']
  #allocation1 [shape = 'u32[144,128]{1,0:T(1,128)}', space=vmem, size = 0x12000, scoped, tag = 'internal scratch']
  #allocation2 [shape = 'f32[256,128]{1,0:T(8,128)}', space=vmem, size = 0x20000, scoped, tag = 'scratch operand']
  %s0 = inlined_call_operand.vmem [shape: bf16[9,512,4], index: 0, kind: input, shape index: {}]
  %s1 = inlined_call_operand.vmem [shape: bf16[9,4,128], index: 1, kind: input, shape index: {}]
  %s2 = inlined_call_operand.vmem [shape: f32[1,128], index: 2, kind: input, shape index: {}]
  %s3 = inlined_call_operand.vmem [shape: bf16[512,128], index: 3, kind: output, shape index: {}]
  %s4 = sld [smem:[#allocation0]]
  $region53: #{darknet_forward.6} parent=0
    _
  %s6 = ssub.s32 1, %s4
  %s7 = scalar_select 0, %s6, %s4
  loop: start=0, step=1, limit=20
  $region2: #{darknet_forward.6} parent=0 // loop_pre_header
    _
  $region3: #{darknet_forward.6} parent=0 // loop_header
    %s9 = sphi 0, %s13
    %p10 = scmp.ge.s32.totalorder %s9, 20
    %s16 = sphi 0, %s35
    %s17 = sphi 0, %s31
    %s18 = sphi 0, %s27
    %s19 = sphi 0, %s16
    %s20 = sphi 0, %s17
    %s21 = sphi 0, %s18
    %s22 = sphi 0, %s19
    %s23 = sphi 0, %s20
    %s24 = sphi 0, %s21
    %s40 = sphi 0, %s42
    %s43 = sphi 0, %s40
    %s44 = sphi 0, %s43
    %s60 = sphi 0, %s44
    %s68 = sphi 0, %s70
    %s71 = sphi 0, %s68
    %s72 = sphi 0, %s71
    %s88 = sphi 0, %s72
    %s94 = sphi 0, %s96
    %s97 = sphi 0, %s94
    %s98 = sphi 0, %s97
    %s114 = sphi 0, %s98
    %s122 = sphi 0, %s124
    %s125 = sphi 0, %s122
    %s126 = sphi 0, %s125
    %s142 = sphi 0, %s126
  $region4: #{darknet_forward.6} parent=0 // loop_header_branch
    %12 = sbr.rel (%p10) target = $region8
  $region5: #{darknet_forward.6} parent=0 // loop_body
    %s14 = ssub.s32 %s9, 1
    %s15 = ssub.s32 %s9, 2
    %s25 = sadd.s32 1, %s18
    %p26 = scmp.ge.s32.totalorder %s25, 9
    %s27 = scalar_select %p26, 0, %s25
    %s28 = sadd.s32 1, %s17
    %s29 = scalar_select %p26, %s28, %s17
    %p30 = scmp.ge.s32.totalorder %s29, 1
    %s31 = scalar_select %p30, 0, %s29
    %s32 = sadd.s32 1, %s16
    %s33 = scalar_select %p30, %s32, %s16
    %p34 = scmp.ge.s32.totalorder %s33, 2
    %s35 = scalar_select %p34, 0, %s33
    %s36 = ssub.s32 %s18, %s27
    %s37 = ssub.s32 %s16, %s35
    %s38 = sor.u32 %s36, %s37
    %p39 = scmp.eq.s32.totalorder %s38, 0
    %s41 = sadd.s32 %s40, 1
    %s42 = scalar_select %p39, %s40, %s41
    %p45 = pneg %p39
    %p46 = scmp.eq.s32.totalorder %s9, 17
    %p47 = por %p45, %p46
    %p48 = scmp.ne.s32.totalorder %s40, %s43
    %p49 = scmp.eq.s32.totalorder %s9, 0
    %p50 = por %p48, %p49
    %p51 = scmp.ne.s32.totalorder %s40, %s43
    %p52 = scmp.eq.s32.totalorder %s14, 17
    %p53 = por %p51, %p52
    %p54 = scmp.ne.s32.totalorder %s43, %s44
    %p55 = scmp.eq.s32.totalorder %s14, 0
    %p56 = por %p54, %p55
    %p57 = scmp.ne.s32.totalorder %s43, %s44
    %p58 = scmp.eq.s32.totalorder %s15, 17
    %p59 = por %p57, %p58
    %p61 = scmp.ne.s32.totalorder %s44, %s60
    %p62 = scmp.eq.s32.totalorder %s15, 0
    %p63 = por %p61, %p62
    %s64 = ssub.s32 %s18, %s27
    %s65 = ssub.s32 %s17, %s31
    %s66 = sor.u32 %s64, %s65
    %p67 = scmp.eq.s32.totalorder %s66, 0
    %s69 = sadd.s32 %s68, 1
    %s70 = scalar_select %p67, %s68, %s69
    %p73 = pneg %p67
    %p74 = scmp.eq.s32.totalorder %s9, 17
    %p75 = por %p73, %p74
    %p76 = scmp.ne.s32.totalorder %s68, %s71
    %p77 = scmp.eq.s32.totalorder %s9, 0
    %p78 = por %p76, %p77
    %p79 = scmp.ne.s32.totalorder %s68, %s71
    %p80 = scmp.eq.s32.totalorder %s14, 17
    %p81 = por %p79, %p80
    %p82 = scmp.ne.s32.totalorder %s71, %s72
    %p83 = scmp.eq.s32.totalorder %s14, 0
    %p84 = por %p82, %p83
    %p85 = scmp.ne.s32.totalorder %s71, %s72
    %p86 = scmp.eq.s32.totalorder %s15, 17
    %p87 = por %p85, %p86
    %p89 = scmp.ne.s32.totalorder %s72, %s88
    %p90 = scmp.eq.s32.totalorder %s15, 0
    %p91 = por %p89, %p90
    %s92 = ssub.s32 %s17, %s31
    %p93 = scmp.eq.s32.totalorder %s92, 0
    %s95 = sadd.s32 %s94, 1
    %s96 = scalar_select %p93, %s94, %s95
    %p99 = pneg %p93
    %p100 = scmp.eq.s32.totalorder %s9, 17
    %p101 = por %p99, %p100
    %p102 = scmp.ne.s32.totalorder %s94, %s97
    %p103 = scmp.eq.s32.totalorder %s9, 0
    %p104 = por %p102, %p103
    %p105 = scmp.ne.s32.totalorder %s94, %s97
    %p106 = scmp.eq.s32.totalorder %s14, 17
    %p107 = por %p105, %p106
    %p108 = scmp.ne.s32.totalorder %s97, %s98
    %p109 = scmp.eq.s32.totalorder %s14, 0
    %p110 = por %p108, %p109
    %p111 = scmp.ne.s32.totalorder %s97, %s98
    %p112 = scmp.eq.s32.totalorder %s15, 17
    %p113 = por %p111, %p112
    %p115 = scmp.ne.s32.totalorder %s98, %s114
    %p116 = scmp.eq.s32.totalorder %s15, 0
    %p117 = por %p115, %p116
    %s118 = ssub.s32 %s16, %s35
    %s119 = ssub.s32 %s17, %s31
    %s120 = sor.u32 %s118, %s119
    %p121 = scmp.eq.s32.totalorder %s120, 0
    %s123 = sadd.s32 %s122, 1
    %s124 = scalar_select %p121, %s122, %s123
    %p127 = pneg %p121
    %p128 = scmp.eq.s32.totalorder %s9, 17
    %p129 = por %p127, %p128
    %p130 = scmp.ne.s32.totalorder %s122, %s125
    %p131 = scmp.eq.s32.totalorder %s9, 0
    %p132 = por %p130, %p131
    %p133 = scmp.ne.s32.totalorder %s122, %s125
    %p134 = scmp.eq.s32.totalorder %s14, 17
    %p135 = por %p133, %p134
    %p136 = scmp.ne.s32.totalorder %s125, %s126
    %p137 = scmp.eq.s32.totalorder %s14, 0
    %p138 = por %p136, %p137
    %p139 = scmp.ne.s32.totalorder %s125, %s126
    %p140 = scmp.eq.s32.totalorder %s15, 17
    %p141 = por %p139, %p140
    %p143 = scmp.ne.s32.totalorder %s126, %s142
    %p144 = scmp.eq.s32.totalorder %s15, 0
    %p145 = por %p143, %p144
    %p146 = scmp.le.s32.totalorder 1, %s9
    %p147 = scmp.lt.s32.totalorder %s9, 19
    %p148 = pnand %p146, %p147
    %p149 = pneg %p148
    // Predicated region
    $region9: #{darknet_forward.6} parent=5 // pred_check
      _
    $region10: #{darknet_forward.6} parent=5 // pred_check_branch
      %151 = sbr.rel (%p148) target = $region12
    $region11: #{darknet_forward.6} parent=5 // pred_region
      %s152 = ssub.s32 %s9, 1
      // Predicated region
      $region13: #{darknet_forward.6} parent=11 // pred_check
        %p153 = pneg %p110
      $region14: #{darknet_forward.6} parent=11 // pred_check_branch
        %155 = sbr.rel (%p153) target = $region16
      $region15: #{darknet_forward.6} parent=11 // pred_region
        %p156 = scmp.lt.s32.totalorder %s20, 0
        %s157 = scalar_select %p156, %s20, 0
        %s158 = scalar_lea.vmem %s2, %s157
      $region16: #{darknet_forward.6} parent=11 // pred_fallthru
        _
    $region12: #{darknet_forward.6} parent=5 // pred_fallthru
      _
    %p159 = scmp.lt.s32.totalorder %s9, 18
    // Predicated region
    $region17: #{darknet_forward.6} parent=5 // pred_check
      %p160 = pneg %p159
    $region18: #{darknet_forward.6} parent=5 // pred_check_branch
      %162 = sbr.rel (%p160) target = $region20
    $region19: #{darknet_forward.6} parent=5 // pred_region
      // Predicated region
      $region21: #{darknet_forward.6} parent=19 // pred_check
        %p163 = pneg %p50
      $region22: #{darknet_forward.6} parent=19 // pred_check_branch
        %165 = sbr.rel (%p163) target = $region24
      $region23: #{darknet_forward.6} parent=19 // pred_region
        %s166 = smul.u32 32, %s16
        %p167 = scmp.lt.s32.totalorder %s18, 8
        %s168 = scalar_select %p167, %s18, 8
        %p169 = scmp.lt.s32.totalorder %s166, 63
        %s170 = scalar_select %p169, %s166, 63
        %s171 = smul.addr %s168, 64
        %s172 = sadd.s32 %s170, %s171
        %s173 = smul.addr %s172, 4
        %s174 = scalar_lea.vmem %s0, %s173
        %s175 = smul.u32 32, %s16
      $region24: #{darknet_forward.6} parent=19 // pred_fallthru
        _
      // Predicated region
      $region25: #{darknet_forward.6} parent=19 // pred_check
        %p176 = pneg %p78
      $region26: #{darknet_forward.6} parent=19 // pred_check_branch
        %178 = sbr.rel (%p176) target = $region28
      $region27: #{darknet_forward.6} parent=19 // pred_region
        %p179 = scmp.lt.s32.totalorder %s18, 8
        %s180 = scalar_select %p179, %s18, 8
        %p181 = scmp.lt.s32.totalorder %s17, 0
        %s182 = scalar_select %p181, %s17, 0
        %s183 = sadd.s32 %s182, %s180
        %s184 = smul.addr %s183, 2
        %s185 = scalar_lea.vmem %s1, %s184
      $region28: #{darknet_forward.6} parent=19 // pred_fallthru
        _
    $region20: #{darknet_forward.6} parent=5 // pred_fallthru
      _
    %p186 = scmp.le.s32.totalorder 1, %s9
    %p187 = scmp.lt.s32.totalorder %s9, 19
    %p188 = pnand %p186, %p187
    %p189 = pneg %p188
    // Predicated region
    $region29: #{darknet_forward.6} parent=5 // pred_check
      _
    $region30: #{darknet_forward.6} parent=5 // pred_check_branch
      %191 = sbr.rel (%p188) target = $region32
    $region31: #{darknet_forward.6} parent=5 // pred_region
      %s192 = ssub.s32 %s9, 1
      %s193 = smul.u32 32, %s19
      %p194 = scmp.lt.s32.totalorder %s21, 8
      %s195 = scalar_select %p194, %s21, 8
      %p196 = scmp.lt.s32.totalorder %s193, 63
      %s197 = scalar_select %p196, %s193, 63
      %s198 = smul.addr %s195, 64
      %s199 = sadd.s32 %s197, %s198
      %s200 = smul.addr %s199, 4
      %s201 = scalar_lea.vmem %s0, %s200
      %p202 = pneg %p56
      %p203 = pneg %p53
      %p204 = scmp.lt.s32.totalorder %s21, 8
      %s205 = scalar_select %p204, %s21, 8
      %p206 = scmp.lt.s32.totalorder %s20, 0
      %s207 = scalar_select %p206, %s20, 0
      %s208 = sadd.s32 %s207, %s205
      %s209 = smul.addr %s208, 2
      %s210 = scalar_lea.vmem %s1, %s209
      %p211 = pneg %p84
      %p212 = pneg %p81
      %p213 = scmp.lt.s32.totalorder %s20, 0
      %s214 = scalar_select %p213, %s20, 0
      %s215 = scalar_lea.vmem %s2, %s214
      %p216 = pneg %p110
      %p217 = pneg %p107
      %p218 = pneg %p138
      %p219 = pneg %p135
      %s220 = smul.u32 32, %s19
      %p221 = scmp.lt.s32.totalorder %s220, 63
      %s222 = scalar_select %p221, %s220, 63
      %p223 = scmp.lt.s32.totalorder %s20, 0
      %s224 = scalar_select %p223, %s20, 0
      %s225 = sadd.s32 %s224, %s222
      %s226 = smul.addr %s225, 4
      %s227 = scalar_lea.vmem %s3, %s226
      %s228 = smul.u32 32, %s19
      %p229 = scmp.lt.s32.totalorder %s21, 8
      %s230 = scalar_select %p229, %s21, 8
      %p231 = scmp.lt.s32.totalorder %s228, 63
      %s232 = scalar_select %p231, %s228, 63
      %s233 = smul.addr %s230, 64
      %s234 = sadd.s32 %s232, %s233
      %s235 = smul.addr %s234, 4
      %s236 = scalar_lea.vmem %s0, %s235
      %s237 = smul.u32 32, %s19
      %p238 = scmp.lt.s32.totalorder %s21, 8
      %s239 = scalar_select %p238, %s21, 8
      %p240 = scmp.lt.s32.totalorder %s20, 0
      %s241 = scalar_select %p240, %s20, 0
      %s242 = sadd.s32 %s241, %s239
      %s243 = smul.addr %s242, 2
      %s244 = scalar_lea.vmem %s1, %s243
      %p245 = scmp.lt.s32.totalorder %s20, 0
      %s246 = scalar_select %p245, %s20, 0
      %s247 = scalar_lea.vmem %s2, %s246
      %s248 = smul.u32 32, %s19
      %p249 = scmp.lt.s32.totalorder %s248, 63
      %s250 = scalar_select %p249, %s248, 63
      %p251 = scmp.lt.s32.totalorder %s20, 0
      %s252 = scalar_select %p251, %s20, 0
      %s253 = sadd.s32 %s252, %s250
      %s254 = smul.addr %s253, 4
      %s255 = scalar_lea.vmem %s3, %s254
      %s256 = smul.u32 32, %s19
      %p258 = scmp.eq.s32.totalorder %s21, 0
      // Predicated region
      $region33: #{darknet_forward.6} parent=31 // pred_check
        %p259 = pneg %p258
      $region34: #{darknet_forward.6} parent=31 // pred_check_branch
        %261 = sbr.rel (%p259) target = $region36
      $region35: #{darknet_forward.6} parent=31 // pred_region
        %262 = vst [vmem:[#allocation2] sm:$0xff] 0.0
        %263 = vst [vmem:[#allocation2 + $0x8] sm:$0xff] 0.0
        %264 = vst [vmem:[#allocation2 + $0x10] sm:$0xff] 0.0
        %265 = vst [vmem:[#allocation2 + $0x18] sm:$0xff] 0.0
        %266 = vst [vmem:[#allocation2 + $0x20] sm:$0xff] 0.0
        %267 = vst [vmem:[#allocation2 + $0x28] sm:$0xff] 0.0
        %268 = vst [vmem:[#allocation2 + $0x30] sm:$0xff] 0.0
        %269 = vst [vmem:[#allocation2 + $0x38] sm:$0xff] 0.0
        %270 = vst [vmem:[#allocation2 + $0x40] sm:$0xff] 0.0
        %271 = vst [vmem:[#allocation2 + $0x48] sm:$0xff] 0.0
        %272 = vst [vmem:[#allocation2 + $0x50] sm:$0xff] 0.0
        %273 = vst [vmem:[#allocation2 + $0x58] sm:$0xff] 0.0
        %274 = vst [vmem:[#allocation2 + $0x60] sm:$0xff] 0.0
        %275 = vst [vmem:[#allocation2 + $0x68] sm:$0xff] 0.0
        %276 = vst [vmem:[#allocation2 + $0x70] sm:$0xff] 0.0
        %277 = vst [vmem:[#allocation2 + $0x78] sm:$0xff] 0.0
        %278 = vst [vmem:[#allocation2 + $0x80] sm:$0xff] 0.0
        %279 = vst [vmem:[#allocation2 + $0x88] sm:$0xff] 0.0
        %280 = vst [vmem:[#allocation2 + $0x90] sm:$0xff] 0.0
        %281 = vst [vmem:[#allocation2 + $0x98] sm:$0xff] 0.0
        %282 = vst [vmem:[#allocation2 + $0xa0] sm:$0xff] 0.0
        %283 = vst [vmem:[#allocation2 + $0xa8] sm:$0xff] 0.0
        %284 = vst [vmem:[#allocation2 + $0xb0] sm:$0xff] 0.0
        %285 = vst [vmem:[#allocation2 + $0xb8] sm:$0xff] 0.0
        %286 = vst [vmem:[#allocation2 + $0xc0] sm:$0xff] 0.0
        %287 = vst [vmem:[#allocation2 + $0xc8] sm:$0xff] 0.0
        %288 = vst [vmem:[#allocation2 + $0xd0] sm:$0xff] 0.0
        %289 = vst [vmem:[#allocation2 + $0xd8] sm:$0xff] 0.0
        %290 = vst [vmem:[#allocation2 + $0xe0] sm:$0xff] 0.0
        %291 = vst [vmem:[#allocation2 + $0xe8] sm:$0xff] 0.0
        %292 = vst [vmem:[#allocation2 + $0xf0] sm:$0xff] 0.0
        %293 = vst [vmem:[#allocation2 + $0xf8] sm:$0xff] 0.0
      $region36: #{darknet_forward.6} parent=31 // pred_fallthru
        _
      %v294 = vld [vmem:[#allocation2] sm:$0xff]
      %v295 = vld [vmem:[#allocation2 + $0x8] sm:$0xff]
      %v296 = vld [vmem:[#allocation2 + $0x10] sm:$0xff]
      %v297 = vld [vmem:[#allocation2 + $0x18] sm:$0xff]
      %v298 = vld [vmem:[#allocation2 + $0x20] sm:$0xff]
      %v299 = vld [vmem:[#allocation2 + $0x28] sm:$0xff]
      %v300 = vld [vmem:[#allocation2 + $0x30] sm:$0xff]
      %v301 = vld [vmem:[#allocation2 + $0x38] sm:$0xff]
      %v302 = vld [vmem:[#allocation2 + $0x40] sm:$0xff]
      %v303 = vld [vmem:[#allocation2 + $0x48] sm:$0xff]
      %v304 = vld [vmem:[#allocation2 + $0x50] sm:$0xff]
      %v305 = vld [vmem:[#allocation2 + $0x58] sm:$0xff]
      %v306 = vld [vmem:[#allocation2 + $0x60] sm:$0xff]
      %v307 = vld [vmem:[#allocation2 + $0x68] sm:$0xff]
      %v308 = vld [vmem:[#allocation2 + $0x70] sm:$0xff]
      %v309 = vld [vmem:[#allocation2 + $0x78] sm:$0xff]
      %v310 = vld [vmem:[#allocation2 + $0x80] sm:$0xff]
      %v311 = vld [vmem:[#allocation2 + $0x88] sm:$0xff]
      %v312 = vld [vmem:[#allocation2 + $0x90] sm:$0xff]
      %v313 = vld [vmem:[#allocation2 + $0x98] sm:$0xff]
      %v314 = vld [vmem:[#allocation2 + $0xa0] sm:$0xff]
      %v315 = vld [vmem:[#allocation2 + $0xa8] sm:$0xff]
      %v316 = vld [vmem:[#allocation2 + $0xb0] sm:$0xff]
      %v317 = vld [vmem:[#allocation2 + $0xb8] sm:$0xff]
      %v318 = vld [vmem:[#allocation2 + $0xc0] sm:$0xff]
      %v319 = vld [vmem:[#allocation2 + $0xc8] sm:$0xff]
      %v320 = vld [vmem:[#allocation2 + $0xd0] sm:$0xff]
      %v321 = vld [vmem:[#allocation2 + $0xd8] sm:$0xff]
      %v322 = vld [vmem:[#allocation2 + $0xe0] sm:$0xff]
      %v323 = vld [vmem:[#allocation2 + $0xe8] sm:$0xff]
      %v324 = vld [vmem:[#allocation2 + $0xf0] sm:$0xff]
      %v325 = vld [vmem:[#allocation2 + $0xf8] sm:$0xff]
      %v326 = vld [vmem:[%s236] sm:$0xf]
      %v327 = vld [vmem:[%s236 + $0x4] sm:$0xf]
      %v328 = vld [vmem:[%s236 + $0x8] sm:$0xf]
      %v329 = vld [vmem:[%s236 + $0xc] sm:$0xf]
      %v330 = vld [vmem:[%s236 + $0x10] sm:$0xf]
      %v331 = vld [vmem:[%s236 + $0x14] sm:$0xf]
      %v332 = vld [vmem:[%s236 + $0x18] sm:$0xf]
      %v333 = vld [vmem:[%s236 + $0x1c] sm:$0xf]
      %v334 = vld [vmem:[%s236 + $0x20] sm:$0xf]
      %v335 = vld [vmem:[%s236 + $0x24] sm:$0xf]
      %v336 = vld [vmem:[%s236 + $0x28] sm:$0xf]
      %v337 = vld [vmem:[%s236 + $0x2c] sm:$0xf]
      %v338 = vld [vmem:[%s236 + $0x30] sm:$0xf]
      %v339 = vld [vmem:[%s236 + $0x34] sm:$0xf]
      %v340 = vld [vmem:[%s236 + $0x38] sm:$0xf]
      %v341 = vld [vmem:[%s236 + $0x3c] sm:$0xf]
      %v342 = vld [vmem:[%s236 + $0x40] sm:$0xf]
      %v343 = vld [vmem:[%s236 + $0x44] sm:$0xf]
      %v344 = vld [vmem:[%s236 + $0x48] sm:$0xf]
      %v345 = vld [vmem:[%s236 + $0x4c] sm:$0xf]
      %v346 = vld [vmem:[%s236 + $0x50] sm:$0xf]
      %v347 = vld [vmem:[%s236 + $0x54] sm:$0xf]
      %v348 = vld [vmem:[%s236 + $0x58] sm:$0xf]
      %v349 = vld [vmem:[%s236 + $0x5c] sm:$0xf]
      %v350 = vld [vmem:[%s236 + $0x60] sm:$0xf]
      %v351 = vld [vmem:[%s236 + $0x64] sm:$0xf]
      %v352 = vld [vmem:[%s236 + $0x68] sm:$0xf]
      %v353 = vld [vmem:[%s236 + $0x6c] sm:$0xf]
      %v354 = vld [vmem:[%s236 + $0x70] sm:$0xf]
      %v355 = vld [vmem:[%s236 + $0x74] sm:$0xf]
      %v356 = vld [vmem:[%s236 + $0x78] sm:$0xf]
      %v357 = vld [vmem:[%s236 + $0x7c] sm:$0xf]
      %v358 = vld [vmem:[%s244] sm:$0x3]
      %v391 = vunpack.c.l.b16 %v326
      %v392 = vunpack.c.l.b16 %v327
      %v393 = vunpack.c.l.b16 %v328
      %v394 = vunpack.c.l.b16 %v329
      %v395 = vunpack.c.l.b16 %v330
      %v396 = vunpack.c.l.b16 %v331
      %v397 = vunpack.c.l.b16 %v332
      %v398 = vunpack.c.l.b16 %v333
      %v399 = vunpack.c.l.b16 %v334
      %v400 = vunpack.c.l.b16 %v335
      %v401 = vunpack.c.l.b16 %v336
      %v402 = vunpack.c.l.b16 %v337
      %v403 = vunpack.c.l.b16 %v338
      %v404 = vunpack.c.l.b16 %v339
      %v405 = vunpack.c.l.b16 %v340
      %v406 = vunpack.c.l.b16 %v341
      %v407 = vunpack.c.l.b16 %v342
      %v408 = vunpack.c.l.b16 %v343
      %v409 = vunpack.c.l.b16 %v344
      %v410 = vunpack.c.l.b16 %v345
      %v411 = vunpack.c.l.b16 %v346
      %v412 = vunpack.c.l.b16 %v347
      %v413 = vunpack.c.l.b16 %v348
      %v414 = vunpack.c.l.b16 %v349
      %v415 = vunpack.c.l.b16 %v350
      %v416 = vunpack.c.l.b16 %v351
      %v417 = vunpack.c.l.b16 %v352
      %v418 = vunpack.c.l.b16 %v353
      %v419 = vunpack.c.l.b16 %v354
      %v420 = vunpack.c.l.b16 %v355
      %v421 = vunpack.c.l.b16 %v356
      %v422 = vunpack.c.l.b16 %v357
      %v423 = vpack.c.b16 %v392, %v391
      %v424 = vpack.c.b16 %v394, %v393
      %v425 = vpack.c.b16 %v396, %v395
      %v426 = vpack.c.b16 %v398, %v397
      %v427 = vpack.c.b16 %v400, %v399
      %v428 = vpack.c.b16 %v402, %v401
      %v429 = vpack.c.b16 %v404, %v403
      %v430 = vpack.c.b16 %v406, %v405
      %v431 = vpack.c.b16 %v408, %v407
      %v432 = vpack.c.b16 %v410, %v409
      %v433 = vpack.c.b16 %v412, %v411
      %v434 = vpack.c.b16 %v414, %v413
      %v435 = vpack.c.b16 %v416, %v415
      %v436 = vpack.c.b16 %v418, %v417
      %v437 = vpack.c.b16 %v420, %v419
      %v438 = vpack.c.b16 %v422, %v421
      %vm439 = vcmask 31744
      %v441 = vsel %vm439, %v423, 0
      %v444 = vsel %vm439, %v424, 0
      %v447 = vsel %vm439, %v425, 0
      %v450 = vsel %vm439, %v426, 0
      %v453 = vsel %vm439, %v427, 0
      %v456 = vsel %vm439, %v428, 0
      %v459 = vsel %vm439, %v429, 0
      %v462 = vsel %vm439, %v430, 0
      %v465 = vsel %vm439, %v431, 0
      %v468 = vsel %vm439, %v432, 0
      %v471 = vsel %vm439, %v433, 0
      %v474 = vsel %vm439, %v434, 0
      %v477 = vsel %vm439, %v435, 0
      %v480 = vsel %vm439, %v436, 0
      %v483 = vsel %vm439, %v437, 0
      %v486 = vsel %vm439, %v438, 0
      %vm488 = vcmask 1041408
      %v490 = vsel %vm488, %v358, 0
      %492 = vmatprep.subr.bf16.mxu0 0
      %493 = vmatpush1.bf16.msra.mxu0 0
      %494 = vmatprep.subr.bf16.mxu0 0
      %495 = vmatpush1.bf16.msra.mxu0 0
      %496 = vmatprep.subr.bf16.mxu0 0
      %497 = vmatpush1.bf16.msra.mxu0 0
      %498 = vmatprep.subr.bf16.mxu0 0
      %499 = vmatpush1.bf16.msra.mxu0 0
      %500 = vmatprep.subr.bf16.mxu0 0
      %501 = vmatpush1.bf16.msra.mxu0 0
      %502 = vmatprep.subr.bf16.mxu0 0
      %503 = vmatpush1.bf16.msra.mxu0 0
      %504 = vmatprep.subr.bf16.mxu0 0
      %505 = vmatpush1.bf16.msra.mxu0 0
      %506 = vmatprep.subr.bf16.mxu0 0
      %507 = vmatpush1.bf16.msra.mxu0 %v490
      %508 = vmatprep.subr.bf16.mxu0 0
      %509 = vmatpush2.bf16.msra.mxu0 0
      %510 = vmatprep.subr.bf16.mxu0 0
      %511 = vmatpush2.bf16.msra.mxu0 0
      %512 = vmatprep.subr.bf16.mxu0 0
      %513 = vmatpush2.bf16.msra.mxu0 0
      %514 = vmatprep.subr.bf16.mxu0 0
      %515 = vmatpush2.bf16.msra.mxu0 0
      %516 = vmatprep.subr.bf16.mxu0 0
      %517 = vmatpush2.bf16.msra.mxu0 0
      %518 = vmatprep.subr.bf16.mxu0 0
      %519 = vmatpush2.bf16.msra.mxu0 0
      %520 = vmatprep.subr.bf16.mxu0 0
      %521 = vmatpush2.bf16.msra.mxu0 0
      %522 = vmatprep.subr.bf16.mxu0 0
      %523 = vmatpush2.bf16.msra.mxu0 0
      %524 = vmatprep.mubr.bf16.mxu0 0
      %525 = vmatmul.mubr.bf16.gmra.mxu0 %v441
      %v526 = vpop.f32.mrf.mxu0
      %v527 = vadd.f32 0.0, %v526
      %v528 = vpop.f32.mrf.mxu0
      %v529 = vpop.f32.mrf.mxu0
      %v530 = vadd.f32 0.0, %v529
      %v531 = vpop.f32.mrf.mxu0
      %532 = vmatprep.mubr.bf16.mxu0 0
      %533 = vmatmul.mubr.bf16.gmra.mxu0 %v444
      %v534 = vpop.f32.mrf.mxu0
      %v535 = vadd.f32 0.0, %v534
      %v536 = vpop.f32.mrf.mxu0
      %v537 = vpop.f32.mrf.mxu0
      %v538 = vadd.f32 0.0, %v537
      %v539 = vpop.f32.mrf.mxu0
      %540 = vmatprep.mubr.bf16.mxu0 0
      %541 = vmatmul.mubr.bf16.gmra.mxu0 %v447
      %v542 = vpop.f32.mrf.mxu0
      %v543 = vadd.f32 0.0, %v542
      %v544 = vpop.f32.mrf.mxu0
      %v545 = vpop.f32.mrf.mxu0
      %v546 = vadd.f32 0.0, %v545
      %v547 = vpop.f32.mrf.mxu0
      %548 = vmatprep.mubr.bf16.mxu0 0
      %549 = vmatmul.mubr.bf16.gmra.mxu0 %v450
      %v550 = vpop.f32.mrf.mxu0
      %v551 = vadd.f32 0.0, %v550
      %v552 = vpop.f32.mrf.mxu0
      %v553 = vpop.f32.mrf.mxu0
      %v554 = vadd.f32 0.0, %v553
      %v555 = vpop.f32.mrf.mxu0
      %556 = vmatprep.mubr.bf16.mxu0 0
      %557 = vmatmul.mubr.bf16.gmra.mxu0 %v453
      %v558 = vpop.f32.mrf.mxu0
      %v559 = vadd.f32 0.0, %v558
      %v560 = vpop.f32.mrf.mxu0
      %v561 = vpop.f32.mrf.mxu0
      %v562 = vadd.f32 0.0, %v561
      %v563 = vpop.f32.mrf.mxu0
      %564 = vmatprep.mubr.bf16.mxu0 0
      %565 = vmatmul.mubr.bf16.gmra.mxu0 %v456
      %v566 = vpop.f32.mrf.mxu0
      %v567 = vadd.f32 0.0, %v566
      %v568 = vpop.f32.mrf.mxu0
      %v569 = vpop.f32.mrf.mxu0
      %v570 = vadd.f32 0.0, %v569
      %v571 = vpop.f32.mrf.mxu0
      %572 = vmatprep.mubr.bf16.mxu0 0
      %573 = vmatmul.mubr.bf16.gmra.mxu0 %v459
      %v574 = vpop.f32.mrf.mxu0
      %v575 = vadd.f32 0.0, %v574
      %v576 = vpop.f32.mrf.mxu0
      %v577 = vpop.f32.mrf.mxu0
      %v578 = vadd.f32 0.0, %v577
      %v579 = vpop.f32.mrf.mxu0
      %580 = vmatprep.mubr.bf16.mxu0 0
      %581 = vmatmul.mubr.bf16.gmra.mxu0 %v462
      %v582 = vpop.f32.mrf.mxu0
      %v583 = vadd.f32 0.0, %v582
      %v584 = vpop.f32.mrf.mxu0
      %v585 = vpop.f32.mrf.mxu0
      %v586 = vadd.f32 0.0, %v585
      %v587 = vpop.f32.mrf.mxu0
      %588 = vmatprep.mubr.bf16.mxu0 0
      %589 = vmatmul.mubr.bf16.gmra.mxu0 %v465
      %v590 = vpop.f32.mrf.mxu0
      %v591 = vadd.f32 0.0, %v590
      %v592 = vpop.f32.mrf.mxu0
      %v593 = vpop.f32.mrf.mxu0
      %v594 = vadd.f32 0.0, %v593
      %v595 = vpop.f32.mrf.mxu0
      %596 = vmatprep.mubr.bf16.mxu0 0
      %597 = vmatmul.mubr.bf16.gmra.mxu0 %v468
      %v598 = vpop.f32.mrf.mxu0
      %v599 = vadd.f32 0.0, %v598
      %v600 = vpop.f32.mrf.mxu0
      %v601 = vpop.f32.mrf.mxu0
      %v602 = vadd.f32 0.0, %v601
      %v603 = vpop.f32.mrf.mxu0
      %604 = vmatprep.mubr.bf16.mxu0 0
      %605 = vmatmul.mubr.bf16.gmra.mxu0 %v471
      %v606 = vpop.f32.mrf.mxu0
      %v607 = vadd.f32 0.0, %v606
      %v608 = vpop.f32.mrf.mxu0
      %v609 = vpop.f32.mrf.mxu0
      %v610 = vadd.f32 0.0, %v609
      %v611 = vpop.f32.mrf.mxu0
      %612 = vmatprep.mubr.bf16.mxu0 0
      %613 = vmatmul.mubr.bf16.gmra.mxu0 %v474
      %v614 = vpop.f32.mrf.mxu0
      %v615 = vadd.f32 0.0, %v614
      %v616 = vpop.f32.mrf.mxu0
      %v617 = vpop.f32.mrf.mxu0
      %v618 = vadd.f32 0.0, %v617
      %v619 = vpop.f32.mrf.mxu0
      %620 = vmatprep.mubr.bf16.mxu0 0
      %621 = vmatmul.mubr.bf16.gmra.mxu0 %v477
      %v622 = vpop.f32.mrf.mxu0
      %v623 = vadd.f32 0.0, %v622
      %v624 = vpop.f32.mrf.mxu0
      %v625 = vpop.f32.mrf.mxu0
      %v626 = vadd.f32 0.0, %v625
      %v627 = vpop.f32.mrf.mxu0
      %628 = vmatprep.mubr.bf16.mxu0 0
      %629 = vmatmul.mubr.bf16.gmra.mxu0 %v480
      %v630 = vpop.f32.mrf.mxu0
      %v631 = vadd.f32 0.0, %v630
      %v632 = vpop.f32.mrf.mxu0
      %v633 = vpop.f32.mrf.mxu0
      %v634 = vadd.f32 0.0, %v633
      %v635 = vpop.f32.mrf.mxu0
      %636 = vmatprep.mubr.bf16.mxu0 0
      %637 = vmatmul.mubr.bf16.gmra.mxu0 %v483
      %v638 = vpop.f32.mrf.mxu0
      %v639 = vadd.f32 0.0, %v638
      %v640 = vpop.f32.mrf.mxu0
      %v641 = vpop.f32.mrf.mxu0
      %v642 = vadd.f32 0.0, %v641
      %v643 = vpop.f32.mrf.mxu0
      %644 = vmatprep.mubr.bf16.mxu0 0
      %645 = vmatmul.mubr.bf16.gmra.mxu0 %v486
      %v646 = vpop.f32.mrf.mxu0
      %v647 = vadd.f32 0.0, %v646
      %v648 = vpop.f32.mrf.mxu0
      %v649 = vpop.f32.mrf.mxu0
      %v650 = vadd.f32 0.0, %v649
      %v651 = vpop.f32.mrf.mxu0
      %652 = vdwg.mxu0
      %v653 = vadd.f32 %v294, %v527
      %v654 = vadd.f32 %v295, %v530
      %v655 = vadd.f32 %v296, %v535
      %v656 = vadd.f32 %v297, %v538
      %v657 = vadd.f32 %v298, %v543
      %v658 = vadd.f32 %v299, %v546
      %v659 = vadd.f32 %v300, %v551
      %v660 = vadd.f32 %v301, %v554
      %v661 = vadd.f32 %v302, %v559
      %v662 = vadd.f32 %v303, %v562
      %v663 = vadd.f32 %v304, %v567
      %v664 = vadd.f32 %v305, %v570
      %v665 = vadd.f32 %v306, %v575
      %v666 = vadd.f32 %v307, %v578
      %v667 = vadd.f32 %v308, %v583
      %v668 = vadd.f32 %v309, %v586
      %v669 = vadd.f32 %v310, %v591
      %v670 = vadd.f32 %v311, %v594
      %v671 = vadd.f32 %v312, %v599
      %v672 = vadd.f32 %v313, %v602
      %v673 = vadd.f32 %v314, %v607
      %v674 = vadd.f32 %v315, %v610
      %v675 = vadd.f32 %v316, %v615
      %v676 = vadd.f32 %v317, %v618
      %v677 = vadd.f32 %v318, %v623
      %v678 = vadd.f32 %v319, %v626
      %v679 = vadd.f32 %v320, %v631
      %v680 = vadd.f32 %v321, %v634
      %v681 = vadd.f32 %v322, %v639
      %v682 = vadd.f32 %v323, %v642
      %v683 = vadd.f32 %v324, %v647
      %v684 = vadd.f32 %v325, %v650
      %685 = vst [vmem:[#allocation2] sm:$0xff] %v653
      %686 = vst [vmem:[#allocation2 + $0x8] sm:$0xff] %v654
      %687 = vst [vmem:[#allocation2 + $0x10] sm:$0xff] %v655
      %688 = vst [vmem:[#allocation2 + $0x18] sm:$0xff] %v656
      %689 = vst [vmem:[#allocation2 + $0x20] sm:$0xff] %v657
      %690 = vst [vmem:[#allocation2 + $0x28] sm:$0xff] %v658
      %691 = vst [vmem:[#allocation2 + $0x30] sm:$0xff] %v659
      %692 = vst [vmem:[#allocation2 + $0x38] sm:$0xff] %v660
      %693 = vst [vmem:[#allocation2 + $0x40] sm:$0xff] %v661
      %694 = vst [vmem:[#allocation2 + $0x48] sm:$0xff] %v662
      %695 = vst [vmem:[#allocation2 + $0x50] sm:$0xff] %v663
      %696 = vst [vmem:[#allocation2 + $0x58] sm:$0xff] %v664
      %697 = vst [vmem:[#allocation2 + $0x60] sm:$0xff] %v665
      %698 = vst [vmem:[#allocation2 + $0x68] sm:$0xff] %v666
      %699 = vst [vmem:[#allocation2 + $0x70] sm:$0xff] %v667
      %700 = vst [vmem:[#allocation2 + $0x78] sm:$0xff] %v668
      %701 = vst [vmem:[#allocation2 + $0x80] sm:$0xff] %v669
      %702 = vst [vmem:[#allocation2 + $0x88] sm:$0xff] %v670
      %703 = vst [vmem:[#allocation2 + $0x90] sm:$0xff] %v671
      %704 = vst [vmem:[#allocation2 + $0x98] sm:$0xff] %v672
      %705 = vst [vmem:[#allocation2 + $0xa0] sm:$0xff] %v673
      %706 = vst [vmem:[#allocation2 + $0xa8] sm:$0xff] %v674
      %707 = vst [vmem:[#allocation2 + $0xb0] sm:$0xff] %v675
      %708 = vst [vmem:[#allocation2 + $0xb8] sm:$0xff] %v676
      %709 = vst [vmem:[#allocation2 + $0xc0] sm:$0xff] %v677
      %710 = vst [vmem:[#allocation2 + $0xc8] sm:$0xff] %v678
      %711 = vst [vmem:[#allocation2 + $0xd0] sm:$0xff] %v679
      %712 = vst [vmem:[#allocation2 + $0xd8] sm:$0xff] %v680
      %713 = vst [vmem:[#allocation2 + $0xe0] sm:$0xff] %v681
      %714 = vst [vmem:[#allocation2 + $0xe8] sm:$0xff] %v682
      %715 = vst [vmem:[#allocation2 + $0xf0] sm:$0xff] %v683
      %716 = vst [vmem:[#allocation2 + $0xf8] sm:$0xff] %v684
      %p717 = scmp.eq.s32.totalorder %s21, 8
      // Predicated region
      $region37: #{darknet_forward.6} parent=31 // pred_check
        %p718 = pneg %p717
      $region38: #{darknet_forward.6} parent=31 // pred_check_branch
        %720 = sbr.rel (%p718) target = $region40
      $region39: #{darknet_forward.6} parent=31 // pred_region
        %v721 = vld [vmem:[#allocation2] sm:$0xff]
        %v722 = vld [vmem:[#allocation2 + $0x8] sm:$0xff]
        %v723 = vld [vmem:[#allocation2 + $0x10] sm:$0xff]
        %v724 = vld [vmem:[#allocation2 + $0x18] sm:$0xff]
        %v725 = vld [vmem:[#allocation2 + $0x20] sm:$0xff]
        %v726 = vld [vmem:[#allocation2 + $0x28] sm:$0xff]
        %v727 = vld [vmem:[#allocation2 + $0x30] sm:$0xff]
        %v728 = vld [vmem:[#allocation2 + $0x38] sm:$0xff]
        %v729 = vld [vmem:[#allocation2 + $0x40] sm:$0xff]
        %v730 = vld [vmem:[#allocation2 + $0x48] sm:$0xff]
        %v731 = vld [vmem:[#allocation2 + $0x50] sm:$0xff]
        %v732 = vld [vmem:[#allocation2 + $0x58] sm:$0xff]
        %v733 = vld [vmem:[#allocation2 + $0x60] sm:$0xff]
        %v734 = vld [vmem:[#allocation2 + $0x68] sm:$0xff]
        %v735 = vld [vmem:[#allocation2 + $0x70] sm:$0xff]
        %v736 = vld [vmem:[#allocation2 + $0x78] sm:$0xff]
        %v737 = vld [vmem:[#allocation2 + $0x80] sm:$0xff]
        %v738 = vld [vmem:[#allocation2 + $0x88] sm:$0xff]
        %v739 = vld [vmem:[#allocation2 + $0x90] sm:$0xff]
        %v740 = vld [vmem:[#allocation2 + $0x98] sm:$0xff]
        %v741 = vld [vmem:[#allocation2 + $0xa0] sm:$0xff]
        %v742 = vld [vmem:[#allocation2 + $0xa8] sm:$0xff]
        %v743 = vld [vmem:[#allocation2 + $0xb0] sm:$0xff]
        %v744 = vld [vmem:[#allocation2 + $0xb8] sm:$0xff]
        %v745 = vld [vmem:[#allocation2 + $0xc0] sm:$0xff]
        %v746 = vld [vmem:[#allocation2 + $0xc8] sm:$0xff]
        %v747 = vld [vmem:[#allocation2 + $0xd0] sm:$0xff]
        %v748 = vld [vmem:[#allocation2 + $0xd8] sm:$0xff]
        %v749 = vld [vmem:[#allocation2 + $0xe0] sm:$0xff]
        %v750 = vld [vmem:[#allocation2 + $0xe8] sm:$0xff]
        %v751 = vld [vmem:[#allocation2 + $0xf0] sm:$0xff]
        %v752 = vld [vmem:[#allocation2 + $0xf8] sm:$0xff]
        %v753 = vld [vmem:[%s247] sm:$0x1]
        %v755 = vlaneseq
        %v756 = vshrl.u32 %v755, 7
        %v757 = vsub.s32 0, %v756
        %v758 = vrot.slane %v753, %v757
        %v760 = vadd.f32 %v721, %v758
        %v761 = vadd.f32 %v722, %v758
        %v762 = vadd.f32 %v723, %v758
        %v763 = vadd.f32 %v724, %v758
        %v764 = vadd.f32 %v725, %v758
        %v765 = vadd.f32 %v726, %v758
        %v766 = vadd.f32 %v727, %v758
        %v767 = vadd.f32 %v728, %v758
        %v768 = vadd.f32 %v729, %v758
        %v769 = vadd.f32 %v730, %v758
        %v770 = vadd.f32 %v731, %v758
        %v771 = vadd.f32 %v732, %v758
        %v772 = vadd.f32 %v733, %v758
        %v773 = vadd.f32 %v734, %v758
        %v774 = vadd.f32 %v735, %v758
        %v775 = vadd.f32 %v736, %v758
        %v776 = vadd.f32 %v737, %v758
        %v777 = vadd.f32 %v738, %v758
        %v778 = vadd.f32 %v739, %v758
        %v779 = vadd.f32 %v740, %v758
        %v780 = vadd.f32 %v741, %v758
        %v781 = vadd.f32 %v742, %v758
        %v782 = vadd.f32 %v743, %v758
        %v783 = vadd.f32 %v744, %v758
        %v784 = vadd.f32 %v745, %v758
        %v785 = vadd.f32 %v746, %v758
        %v786 = vadd.f32 %v747, %v758
        %v787 = vadd.f32 %v748, %v758
        %v788 = vadd.f32 %v749, %v758
        %v789 = vadd.f32 %v750, %v758
        %v790 = vadd.f32 %v751, %v758
        %v791 = vadd.f32 %v752, %v758
        %vm792 = vcmp.ge.f32.partialorder %v760, 0.0
        %vm793 = vcmp.ge.f32.partialorder %v761, 0.0
        %vm794 = vcmp.ge.f32.partialorder %v762, 0.0
        %vm795 = vcmp.ge.f32.partialorder %v763, 0.0
        %vm796 = vcmp.ge.f32.partialorder %v764, 0.0
        %vm797 = vcmp.ge.f32.partialorder %v765, 0.0
        %vm798 = vcmp.ge.f32.partialorder %v766, 0.0
        %vm799 = vcmp.ge.f32.partialorder %v767, 0.0
        %vm800 = vcmp.ge.f32.partialorder %v768, 0.0
        %vm801 = vcmp.ge.f32.partialorder %v769, 0.0
        %vm802 = vcmp.ge.f32.partialorder %v770, 0.0
        %vm803 = vcmp.ge.f32.partialorder %v771, 0.0
        %vm804 = vcmp.ge.f32.partialorder %v772, 0.0
        %vm805 = vcmp.ge.f32.partialorder %v773, 0.0
        %vm806 = vcmp.ge.f32.partialorder %v774, 0.0
        %vm807 = vcmp.ge.f32.partialorder %v775, 0.0
        %vm808 = vcmp.ge.f32.partialorder %v776, 0.0
        %vm809 = vcmp.ge.f32.partialorder %v777, 0.0
        %vm810 = vcmp.ge.f32.partialorder %v778, 0.0
        %vm811 = vcmp.ge.f32.partialorder %v779, 0.0
        %vm812 = vcmp.ge.f32.partialorder %v780, 0.0
        %vm813 = vcmp.ge.f32.partialorder %v781, 0.0
        %vm814 = vcmp.ge.f32.partialorder %v782, 0.0
        %vm815 = vcmp.ge.f32.partialorder %v783, 0.0
        %vm816 = vcmp.ge.f32.partialorder %v784, 0.0
        %vm817 = vcmp.ge.f32.partialorder %v785, 0.0
        %vm818 = vcmp.ge.f32.partialorder %v786, 0.0
        %vm819 = vcmp.ge.f32.partialorder %v787, 0.0
        %vm820 = vcmp.ge.f32.partialorder %v788, 0.0
        %vm821 = vcmp.ge.f32.partialorder %v789, 0.0
        %vm822 = vcmp.ge.f32.partialorder %v790, 0.0
        %vm823 = vcmp.ge.f32.partialorder %v791, 0.0
        %v824 = vmul.f32 %v760, 0.1
        %v825 = vmul.f32 %v761, 0.1
        %v826 = vmul.f32 %v762, 0.1
        %v827 = vmul.f32 %v763, 0.1
        %v828 = vmul.f32 %v764, 0.1
        %v829 = vmul.f32 %v765, 0.1
        %v830 = vmul.f32 %v766, 0.1
        %v831 = vmul.f32 %v767, 0.1
        %v832 = vmul.f32 %v768, 0.1
        %v833 = vmul.f32 %v769, 0.1
        %v834 = vmul.f32 %v770, 0.1
        %v835 = vmul.f32 %v771, 0.1
        %v836 = vmul.f32 %v772, 0.1
        %v837 = vmul.f32 %v773, 0.1
        %v838 = vmul.f32 %v774, 0.1
        %v839 = vmul.f32 %v775, 0.1
        %v840 = vmul.f32 %v776, 0.1
        %v841 = vmul.f32 %v777, 0.1
        %v842 = vmul.f32 %v778, 0.1
        %v843 = vmul.f32 %v779, 0.1
        %v844 = vmul.f32 %v780, 0.1
        %v845 = vmul.f32 %v781, 0.1
        %v846 = vmul.f32 %v782, 0.1
        %v847 = vmul.f32 %v783, 0.1
        %v848 = vmul.f32 %v784, 0.1
        %v849 = vmul.f32 %v785, 0.1
        %v850 = vmul.f32 %v786, 0.1
        %v851 = vmul.f32 %v787, 0.1
        %v852 = vmul.f32 %v788, 0.1
        %v853 = vmul.f32 %v789, 0.1
        %v854 = vmul.f32 %v790, 0.1
        %v855 = vmul.f32 %v791, 0.1
        %v856 = vsel %vm792, %v760, %v824
        %v857 = vsel %vm793, %v761, %v825
        %v858 = vsel %vm794, %v762, %v826
        %v859 = vsel %vm795, %v763, %v827
        %v860 = vsel %vm796, %v764, %v828
        %v861 = vsel %vm797, %v765, %v829
        %v862 = vsel %vm798, %v766, %v830
        %v863 = vsel %vm799, %v767, %v831
        %v864 = vsel %vm800, %v768, %v832
        %v865 = vsel %vm801, %v769, %v833
        %v866 = vsel %vm802, %v770, %v834
        %v867 = vsel %vm803, %v771, %v835
        %v868 = vsel %vm804, %v772, %v836
        %v869 = vsel %vm805, %v773, %v837
        %v870 = vsel %vm806, %v774, %v838
        %v871 = vsel %vm807, %v775, %v839
        %v872 = vsel %vm808, %v776, %v840
        %v873 = vsel %vm809, %v777, %v841
        %v874 = vsel %vm810, %v778, %v842
        %v875 = vsel %vm811, %v779, %v843
        %v876 = vsel %vm812, %v780, %v844
        %v877 = vsel %vm813, %v781, %v845
        %v878 = vsel %vm814, %v782, %v846
        %v879 = vsel %vm815, %v783, %v847
        %v880 = vsel %vm816, %v784, %v848
        %v881 = vsel %vm817, %v785, %v849
        %v882 = vsel %vm818, %v786, %v850
        %v883 = vsel %vm819, %v787, %v851
        %v884 = vsel %vm820, %v788, %v852
        %v885 = vsel %vm821, %v789, %v853
        %v886 = vsel %vm822, %v790, %v854
        %v887 = vsel %vm823, %v791, %v855
        %v888 = vpack.c.bf16 %v857, %v856
        %v889 = vpack.c.bf16 %v859, %v858
        %v890 = vpack.c.bf16 %v861, %v860
        %v891 = vpack.c.bf16 %v863, %v862
        %v892 = vpack.c.bf16 %v865, %v864
        %v893 = vpack.c.bf16 %v867, %v866
        %v894 = vpack.c.bf16 %v869, %v868
        %v895 = vpack.c.bf16 %v871, %v870
        %v896 = vpack.c.bf16 %v873, %v872
        %v897 = vpack.c.bf16 %v875, %v874
        %v898 = vpack.c.bf16 %v877, %v876
        %v899 = vpack.c.bf16 %v879, %v878
        %v900 = vpack.c.bf16 %v881, %v880
        %v901 = vpack.c.bf16 %v883, %v882
        %v902 = vpack.c.bf16 %v885, %v884
        %v903 = vpack.c.bf16 %v887, %v886
        %v920 = vunpack.c.l.b16 %v888
        %v921 = vunpack.c.h.b16 %v888
        %v922 = vunpack.c.l.b16 %v889
        %v923 = vunpack.c.h.b16 %v889
        %v924 = vunpack.c.l.b16 %v890
        %v925 = vunpack.c.h.b16 %v890
        %v926 = vunpack.c.l.b16 %v891
        %v927 = vunpack.c.h.b16 %v891
        %v928 = vunpack.c.l.b16 %v892
        %v929 = vunpack.c.h.b16 %v892
        %v930 = vunpack.c.l.b16 %v893
        %v931 = vunpack.c.h.b16 %v893
        %v932 = vunpack.c.l.b16 %v894
        %v933 = vunpack.c.h.b16 %v894
        %v934 = vunpack.c.l.b16 %v895
        %v935 = vunpack.c.h.b16 %v895
        %v936 = vunpack.c.l.b16 %v896
        %v937 = vunpack.c.h.b16 %v896
        %v938 = vunpack.c.l.b16 %v897
        %v939 = vunpack.c.h.b16 %v897
        %v940 = vunpack.c.l.b16 %v898
        %v941 = vunpack.c.h.b16 %v898
        %v942 = vunpack.c.l.b16 %v899
        %v943 = vunpack.c.h.b16 %v899
        %v944 = vunpack.c.l.b16 %v900
        %v945 = vunpack.c.h.b16 %v900
        %v946 = vunpack.c.l.b16 %v901
        %v947 = vunpack.c.h.b16 %v901
        %v948 = vunpack.c.l.b16 %v902
        %v949 = vunpack.c.h.b16 %v902
        %v950 = vunpack.c.l.b16 %v903
        %v951 = vunpack.c.h.b16 %v903
        %v952 = vpack.c.b16 %v920, %v920
        %v953 = vpack.c.b16 %v921, %v921
        %v954 = vpack.c.b16 %v922, %v922
        %v955 = vpack.c.b16 %v923, %v923
        %v956 = vpack.c.b16 %v924, %v924
        %v957 = vpack.c.b16 %v925, %v925
        %v958 = vpack.c.b16 %v926, %v926
        %v959 = vpack.c.b16 %v927, %v927
        %v960 = vpack.c.b16 %v928, %v928
        %v961 = vpack.c.b16 %v929, %v929
        %v962 = vpack.c.b16 %v930, %v930
        %v963 = vpack.c.b16 %v931, %v931
        %v964 = vpack.c.b16 %v932, %v932
        %v965 = vpack.c.b16 %v933, %v933
        %v966 = vpack.c.b16 %v934, %v934
        %v967 = vpack.c.b16 %v935, %v935
        %v968 = vpack.c.b16 %v936, %v936
        %v969 = vpack.c.b16 %v937, %v937
        %v970 = vpack.c.b16 %v938, %v938
        %v971 = vpack.c.b16 %v939, %v939
        %v972 = vpack.c.b16 %v940, %v940
        %v973 = vpack.c.b16 %v941, %v941
        %v974 = vpack.c.b16 %v942, %v942
        %v975 = vpack.c.b16 %v943, %v943
        %v976 = vpack.c.b16 %v944, %v944
        %v977 = vpack.c.b16 %v945, %v945
        %v978 = vpack.c.b16 %v946, %v946
        %v979 = vpack.c.b16 %v947, %v947
        %v980 = vpack.c.b16 %v948, %v948
        %v981 = vpack.c.b16 %v949, %v949
        %v982 = vpack.c.b16 %v950, %v950
        %v983 = vpack.c.b16 %v951, %v951
        %1016 = vst [vmem:[%s255] sm:$0xf] %v952
        %1017 = vst [vmem:[%s255 + $0x4] sm:$0xf] %v953
        %1018 = vst [vmem:[%s255 + $0x8] sm:$0xf] %v954
        %1019 = vst [vmem:[%s255 + $0xc] sm:$0xf] %v955
        %1020 = vst [vmem:[%s255 + $0x10] sm:$0xf] %v956
        %1021 = vst [vmem:[%s255 + $0x14] sm:$0xf] %v957
        %1022 = vst [vmem:[%s255 + $0x18] sm:$0xf] %v958
        %1023 = vst [vmem:[%s255 + $0x1c] sm:$0xf] %v959
        %1024 = vst [vmem:[%s255 + $0x20] sm:$0xf] %v960
        %1025 = vst [vmem:[%s255 + $0x24] sm:$0xf] %v961
        %1026 = vst [vmem:[%s255 + $0x28] sm:$0xf] %v962
        %1027 = vst [vmem:[%s255 + $0x2c] sm:$0xf] %v963
        %1028 = vst [vmem:[%s255 + $0x30] sm:$0xf] %v964
        %1029 = vst [vmem:[%s255 + $0x34] sm:$0xf] %v965
        %1030 = vst [vmem:[%s255 + $0x38] sm:$0xf] %v966
        %1031 = vst [vmem:[%s255 + $0x3c] sm:$0xf] %v967
        %1032 = vst [vmem:[%s255 + $0x40] sm:$0xf] %v968
        %1033 = vst [vmem:[%s255 + $0x44] sm:$0xf] %v969
        %1034 = vst [vmem:[%s255 + $0x48] sm:$0xf] %v970
        %1035 = vst [vmem:[%s255 + $0x4c] sm:$0xf] %v971
        %1036 = vst [vmem:[%s255 + $0x50] sm:$0xf] %v972
        %1037 = vst [vmem:[%s255 + $0x54] sm:$0xf] %v973
        %1038 = vst [vmem:[%s255 + $0x58] sm:$0xf] %v974
        %1039 = vst [vmem:[%s255 + $0x5c] sm:$0xf] %v975
        %1040 = vst [vmem:[%s255 + $0x60] sm:$0xf] %v976
        %1041 = vst [vmem:[%s255 + $0x64] sm:$0xf] %v977
        %1042 = vst [vmem:[%s255 + $0x68] sm:$0xf] %v978
        %1043 = vst [vmem:[%s255 + $0x6c] sm:$0xf] %v979
        %1044 = vst [vmem:[%s255 + $0x70] sm:$0xf] %v980
        %1045 = vst [vmem:[%s255 + $0x74] sm:$0xf] %v981
        %1046 = vst [vmem:[%s255 + $0x78] sm:$0xf] %v982
        %1047 = vst [vmem:[%s255 + $0x7c] sm:$0xf] %v983
      $region40: #{darknet_forward.6} parent=31 // pred_fallthru
        _
      %s1048 = smul.u32 32, %s19
      %p1049 = scmp.lt.s32.totalorder %s1048, 63
      %s1050 = scalar_select %p1049, %s1048, 63
      %p1051 = scmp.lt.s32.totalorder %s20, 0
      %s1052 = scalar_select %p1051, %s20, 0
      %s1053 = sadd.s32 %s1052, %s1050
      %s1054 = smul.addr %s1053, 4
      %s1055 = scalar_lea.vmem %s3, %s1054
      // Predicated region
      $region41: #{darknet_forward.6} parent=31 // pred_check
        %p1056 = pneg %p135
      $region42: #{darknet_forward.6} parent=31 // pred_check_branch
        %1058 = sbr.rel (%p1056) target = $region44
      $region43: #{darknet_forward.6} parent=31 // pred_region
        %s1059 = smul.u32 32, %s19
      $region44: #{darknet_forward.6} parent=31 // pred_fallthru
        _
    $region32: #{darknet_forward.6} parent=5 // pred_fallthru
      _
    %p1060 = scmp.le.s32.totalorder 2, %s9
    // Predicated region
    $region45: #{darknet_forward.6} parent=5 // pred_check
      %p1061 = pneg %p1060
    $region46: #{darknet_forward.6} parent=5 // pred_check_branch
      %1063 = sbr.rel (%p1061) target = $region48
    $region47: #{darknet_forward.6} parent=5 // pred_region
      %s1064 = ssub.s32 %s9, 2
      // Predicated region
      $region49: #{darknet_forward.6} parent=47 // pred_check
        %p1065 = pneg %p141
      $region50: #{darknet_forward.6} parent=47 // pred_check_branch
        %1067 = sbr.rel (%p1065) target = $region52
      $region51: #{darknet_forward.6} parent=47 // pred_region
        %s1068 = smul.u32 32, %s22
        %p1069 = scmp.lt.s32.totalorder %s1068, 63
        %s1070 = scalar_select %p1069, %s1068, 63
        %p1071 = scmp.lt.s32.totalorder %s23, 0
        %s1072 = scalar_select %p1071, %s23, 0
        %s1073 = sadd.s32 %s1072, %s1070
        %s1074 = smul.addr %s1073, 4
        %s1075 = scalar_lea.vmem %s3, %s1074
      $region52: #{darknet_forward.6} parent=47 // pred_fallthru
        _
    $region48: #{darknet_forward.6} parent=5 // pred_fallthru
      _
  $region6: #{darknet_forward.6} parent=0 // loop_footer
    %s13 = sadd.s32 1, %s9
  $region7: #{darknet_forward.6} parent=0 // loop_footer_branch
    %8 = sbr.rel target = $region3
  $region8: #{darknet_forward.6} parent=0 // loop_exit
    _

// kernel: darknet_forward.8
$region0: #{darknet_forward.8}
  #allocation0 [shape = 'u32[]', space=smem, size = 0x4, offset = 0x4, fixed_abs, tag = 'smem constant byte address 0x4 - core index']
  #allocation1 [shape = 'u32[144,128]{1,0:T(1,128)}', space=vmem, size = 0x12000, scoped, tag = 'internal scratch']
  #allocation2 [shape = 'f32[64,128]{1,0:T(8,128)}', space=vmem, size = 0x8000, scoped, tag = 'scratch operand']
  %s0 = inlined_call_operand.vmem [shape: bf16[9,128,8], index: 0, kind: input, shape index: {}]
  %s1 = inlined_call_operand.vmem [shape: bf16[9,8,128], index: 1, kind: input, shape index: {}]
  %s2 = inlined_call_operand.vmem [shape: f32[1,128], index: 2, kind: input, shape index: {}]
  %s3 = inlined_call_operand.vmem [shape: bf16[128,128], index: 3, kind: output, shape index: {}]
  %s4 = sld [smem:[#allocation0]]
  $region53: #{darknet_forward.8} parent=0
    _
  %s6 = ssub.s32 1, %s4
  %s7 = scalar_select 0, %s6, %s4
  loop: start=0, step=1, limit=20
  $region2: #{darknet_forward.8} parent=0 // loop_pre_header
    _
  $region3: #{darknet_forward.8} parent=0 // loop_header
    %s9 = sphi 0, %s13
    %p10 = scmp.ge.s32.totalorder %s9, 20
    %s16 = sphi 0, %s35
    %s17 = sphi 0, %s31
    %s18 = sphi 0, %s27
    %s19 = sphi 0, %s16
    %s20 = sphi 0, %s17
    %s21 = sphi 0, %s18
    %s22 = sphi 0, %s19
    %s23 = sphi 0, %s20
    %s24 = sphi 0, %s21
    %s40 = sphi 0, %s42
    %s43 = sphi 0, %s40
    %s44 = sphi 0, %s43
    %s60 = sphi 0, %s44
    %s68 = sphi 0, %s70
    %s71 = sphi 0, %s68
    %s72 = sphi 0, %s71
    %s88 = sphi 0, %s72
    %s94 = sphi 0, %s96
    %s97 = sphi 0, %s94
    %s98 = sphi 0, %s97
    %s114 = sphi 0, %s98
    %s122 = sphi 0, %s124
    %s125 = sphi 0, %s122
    %s126 = sphi 0, %s125
    %s142 = sphi 0, %s126
  $region4: #{darknet_forward.8} parent=0 // loop_header_branch
    %12 = sbr.rel (%p10) target = $region8
  $region5: #{darknet_forward.8} parent=0 // loop_body
    %s14 = ssub.s32 %s9, 1
    %s15 = ssub.s32 %s9, 2
    %s25 = sadd.s32 1, %s18
    %p26 = scmp.ge.s32.totalorder %s25, 9
    %s27 = scalar_select %p26, 0, %s25
    %s28 = sadd.s32 1, %s17
    %s29 = scalar_select %p26, %s28, %s17
    %p30 = scmp.ge.s32.totalorder %s29, 1
    %s31 = scalar_select %p30, 0, %s29
    %s32 = sadd.s32 1, %s16
    %s33 = scalar_select %p30, %s32, %s16
    %p34 = scmp.ge.s32.totalorder %s33, 2
    %s35 = scalar_select %p34, 0, %s33
    %s36 = ssub.s32 %s18, %s27
    %s37 = ssub.s32 %s16, %s35
    %s38 = sor.u32 %s36, %s37
    %p39 = scmp.eq.s32.totalorder %s38, 0
    %s41 = sadd.s32 %s40, 1
    %s42 = scalar_select %p39, %s40, %s41
    %p45 = pneg %p39
    %p46 = scmp.eq.s32.totalorder %s9, 17
    %p47 = por %p45, %p46
    %p48 = scmp.ne.s32.totalorder %s40, %s43
    %p49 = scmp.eq.s32.totalorder %s9, 0
    %p50 = por %p48, %p49
    %p51 = scmp.ne.s32.totalorder %s40, %s43
    %p52 = scmp.eq.s32.totalorder %s14, 17
    %p53 = por %p51, %p52
    %p54 = scmp.ne.s32.totalorder %s43, %s44
    %p55 = scmp.eq.s32.totalorder %s14, 0
    %p56 = por %p54, %p55
    %p57 = scmp.ne.s32.totalorder %s43, %s44
    %p58 = scmp.eq.s32.totalorder %s15, 17
    %p59 = por %p57, %p58
    %p61 = scmp.ne.s32.totalorder %s44, %s60
    %p62 = scmp.eq.s32.totalorder %s15, 0
    %p63 = por %p61, %p62
    %s64 = ssub.s32 %s18, %s27
    %s65 = ssub.s32 %s17, %s31
    %s66 = sor.u32 %s64, %s65
    %p67 = scmp.eq.s32.totalorder %s66, 0
    %s69 = sadd.s32 %s68, 1
    %s70 = scalar_select %p67, %s68, %s69
    %p73 = pneg %p67
    %p74 = scmp.eq.s32.totalorder %s9, 17
    %p75 = por %p73, %p74
    %p76 = scmp.ne.s32.totalorder %s68, %s71
    %p77 = scmp.eq.s32.totalorder %s9, 0
    %p78 = por %p76, %p77
    %p79 = scmp.ne.s32.totalorder %s68, %s71
    %p80 = scmp.eq.s32.totalorder %s14, 17
    %p81 = por %p79, %p80
    %p82 = scmp.ne.s32.totalorder %s71, %s72
    %p83 = scmp.eq.s32.totalorder %s14, 0
    %p84 = por %p82, %p83
    %p85 = scmp.ne.s32.totalorder %s71, %s72
    %p86 = scmp.eq.s32.totalorder %s15, 17
    %p87 = por %p85, %p86
    %p89 = scmp.ne.s32.totalorder %s72, %s88
    %p90 = scmp.eq.s32.totalorder %s15, 0
    %p91 = por %p89, %p90
    %s92 = ssub.s32 %s17, %s31
    %p93 = scmp.eq.s32.totalorder %s92, 0
    %s95 = sadd.s32 %s94, 1
    %s96 = scalar_select %p93, %s94, %s95
    %p99 = pneg %p93
    %p100 = scmp.eq.s32.totalorder %s9, 17
    %p101 = por %p99, %p100
    %p102 = scmp.ne.s32.totalorder %s94, %s97
    %p103 = scmp.eq.s32.totalorder %s9, 0
    %p104 = por %p102, %p103
    %p105 = scmp.ne.s32.totalorder %s94, %s97
    %p106 = scmp.eq.s32.totalorder %s14, 17
    %p107 = por %p105, %p106
    %p108 = scmp.ne.s32.totalorder %s97, %s98
    %p109 = scmp.eq.s32.totalorder %s14, 0
    %p110 = por %p108, %p109
    %p111 = scmp.ne.s32.totalorder %s97, %s98
    %p112 = scmp.eq.s32.totalorder %s15, 17
    %p113 = por %p111, %p112
    %p115 = scmp.ne.s32.totalorder %s98, %s114
    %p116 = scmp.eq.s32.totalorder %s15, 0
    %p117 = por %p115, %p116
    %s118 = ssub.s32 %s16, %s35
    %s119 = ssub.s32 %s17, %s31
    %s120 = sor.u32 %s118, %s119
    %p121 = scmp.eq.s32.totalorder %s120, 0
    %s123 = sadd.s32 %s122, 1
    %s124 = scalar_select %p121, %s122, %s123
    %p127 = pneg %p121
    %p128 = scmp.eq.s32.totalorder %s9, 17
    %p129 = por %p127, %p128
    %p130 = scmp.ne.s32.totalorder %s122, %s125
    %p131 = scmp.eq.s32.totalorder %s9, 0
    %p132 = por %p130, %p131
    %p133 = scmp.ne.s32.totalorder %s122, %s125
    %p134 = scmp.eq.s32.totalorder %s14, 17
    %p135 = por %p133, %p134
    %p136 = scmp.ne.s32.totalorder %s125, %s126
    %p137 = scmp.eq.s32.totalorder %s14, 0
    %p138 = por %p136, %p137
    %p139 = scmp.ne.s32.totalorder %s125, %s126
    %p140 = scmp.eq.s32.totalorder %s15, 17
    %p141 = por %p139, %p140
    %p143 = scmp.ne.s32.totalorder %s126, %s142
    %p144 = scmp.eq.s32.totalorder %s15, 0
    %p145 = por %p143, %p144
    %p146 = scmp.le.s32.totalorder 1, %s9
    %p147 = scmp.lt.s32.totalorder %s9, 19
    %p148 = pnand %p146, %p147
    %p149 = pneg %p148
    // Predicated region
    $region9: #{darknet_forward.8} parent=5 // pred_check
      _
    $region10: #{darknet_forward.8} parent=5 // pred_check_branch
      %151 = sbr.rel (%p148) target = $region12
    $region11: #{darknet_forward.8} parent=5 // pred_region
      %s152 = ssub.s32 %s9, 1
      // Predicated region
      $region13: #{darknet_forward.8} parent=11 // pred_check
        %p153 = pneg %p110
      $region14: #{darknet_forward.8} parent=11 // pred_check_branch
        %155 = sbr.rel (%p153) target = $region16
      $region15: #{darknet_forward.8} parent=11 // pred_region
        %p156 = scmp.lt.s32.totalorder %s20, 0
        %s157 = scalar_select %p156, %s20, 0
        %s158 = scalar_lea.vmem %s2, %s157
      $region16: #{darknet_forward.8} parent=11 // pred_fallthru
        _
    $region12: #{darknet_forward.8} parent=5 // pred_fallthru
      _
    %p159 = scmp.lt.s32.totalorder %s9, 18
    // Predicated region
    $region17: #{darknet_forward.8} parent=5 // pred_check
      %p160 = pneg %p159
    $region18: #{darknet_forward.8} parent=5 // pred_check_branch
      %162 = sbr.rel (%p160) target = $region20
    $region19: #{darknet_forward.8} parent=5 // pred_region
      // Predicated region
      $region21: #{darknet_forward.8} parent=19 // pred_check
        %p163 = pneg %p50
      $region22: #{darknet_forward.8} parent=19 // pred_check_branch
        %165 = sbr.rel (%p163) target = $region24
      $region23: #{darknet_forward.8} parent=19 // pred_region
        %s166 = smul.u32 8, %s16
        %p167 = scmp.lt.s32.totalorder %s18, 8
        %s168 = scalar_select %p167, %s18, 8
        %p169 = scmp.lt.s32.totalorder %s166, 15
        %s170 = scalar_select %p169, %s166, 15
        %s171 = smul.addr %s168, 16
        %s172 = sadd.s32 %s170, %s171
        %s173 = smul.addr %s172, 4
        %s174 = scalar_lea.vmem %s0, %s173
        %s175 = smul.u32 8, %s16
      $region24: #{darknet_forward.8} parent=19 // pred_fallthru
        _
      // Predicated region
      $region25: #{darknet_forward.8} parent=19 // pred_check
        %p176 = pneg %p78
      $region26: #{darknet_forward.8} parent=19 // pred_check_branch
        %178 = sbr.rel (%p176) target = $region28
      $region27: #{darknet_forward.8} parent=19 // pred_region
        %p179 = scmp.lt.s32.totalorder %s18, 8
        %s180 = scalar_select %p179, %s18, 8
        %p181 = scmp.lt.s32.totalorder %s17, 0
        %s182 = scalar_select %p181, %s17, 0
        %s183 = sadd.s32 %s182, %s180
        %s184 = smul.addr %s183, 4
        %s185 = scalar_lea.vmem %s1, %s184
      $region28: #{darknet_forward.8} parent=19 // pred_fallthru
        _
    $region20: #{darknet_forward.8} parent=5 // pred_fallthru
      _
    %p186 = scmp.le.s32.totalorder 1, %s9
    %p187 = scmp.lt.s32.totalorder %s9, 19
    %p188 = pnand %p186, %p187
    %p189 = pneg %p188
    // Predicated region
    $region29: #{darknet_forward.8} parent=5 // pred_check
      _
    $region30: #{darknet_forward.8} parent=5 // pred_check_branch
      %191 = sbr.rel (%p188) target = $region32
    $region31: #{darknet_forward.8} parent=5 // pred_region
      %s192 = ssub.s32 %s9, 1
      %s193 = smul.u32 8, %s19
      %p194 = scmp.lt.s32.totalorder %s21, 8
      %s195 = scalar_select %p194, %s21, 8
      %p196 = scmp.lt.s32.totalorder %s193, 15
      %s197 = scalar_select %p196, %s193, 15
      %s198 = smul.addr %s195, 16
      %s199 = sadd.s32 %s197, %s198
      %s200 = smul.addr %s199, 4
      %s201 = scalar_lea.vmem %s0, %s200
      %p202 = pneg %p56
      %p203 = pneg %p53
      %p204 = scmp.lt.s32.totalorder %s21, 8
      %s205 = scalar_select %p204, %s21, 8
      %p206 = scmp.lt.s32.totalorder %s20, 0
      %s207 = scalar_select %p206, %s20, 0
      %s208 = sadd.s32 %s207, %s205
      %s209 = smul.addr %s208, 4
      %s210 = scalar_lea.vmem %s1, %s209
      %p211 = pneg %p84
      %p212 = pneg %p81
      %p213 = scmp.lt.s32.totalorder %s20, 0
      %s214 = scalar_select %p213, %s20, 0
      %s215 = scalar_lea.vmem %s2, %s214
      %p216 = pneg %p110
      %p217 = pneg %p107
      %p218 = pneg %p138
      %p219 = pneg %p135
      %s220 = smul.u32 8, %s19
      %p221 = scmp.lt.s32.totalorder %s220, 15
      %s222 = scalar_select %p221, %s220, 15
      %p223 = scmp.lt.s32.totalorder %s20, 0
      %s224 = scalar_select %p223, %s20, 0
      %s225 = sadd.s32 %s224, %s222
      %s226 = smul.addr %s225, 4
      %s227 = scalar_lea.vmem %s3, %s226
      %s228 = smul.u32 8, %s19
      %p229 = scmp.lt.s32.totalorder %s21, 8
      %s230 = scalar_select %p229, %s21, 8
      %p231 = scmp.lt.s32.totalorder %s228, 15
      %s232 = scalar_select %p231, %s228, 15
      %s233 = smul.addr %s230, 16
      %s234 = sadd.s32 %s232, %s233
      %s235 = smul.addr %s234, 4
      %s236 = scalar_lea.vmem %s0, %s235
      %s237 = smul.u32 8, %s19
      %p238 = scmp.lt.s32.totalorder %s21, 8
      %s239 = scalar_select %p238, %s21, 8
      %p240 = scmp.lt.s32.totalorder %s20, 0
      %s241 = scalar_select %p240, %s20, 0
      %s242 = sadd.s32 %s241, %s239
      %s243 = smul.addr %s242, 4
      %s244 = scalar_lea.vmem %s1, %s243
      %p245 = scmp.lt.s32.totalorder %s20, 0
      %s246 = scalar_select %p245, %s20, 0
      %s247 = scalar_lea.vmem %s2, %s246
      %s248 = smul.u32 8, %s19
      %p249 = scmp.lt.s32.totalorder %s248, 15
      %s250 = scalar_select %p249, %s248, 15
      %p251 = scmp.lt.s32.totalorder %s20, 0
      %s252 = scalar_select %p251, %s20, 0
      %s253 = sadd.s32 %s252, %s250
      %s254 = smul.addr %s253, 4
      %s255 = scalar_lea.vmem %s3, %s254
      %s256 = smul.u32 8, %s19
      %p258 = scmp.eq.s32.totalorder %s21, 0
      // Predicated region
      $region33: #{darknet_forward.8} parent=31 // pred_check
        %p259 = pneg %p258
      $region34: #{darknet_forward.8} parent=31 // pred_check_branch
        %261 = sbr.rel (%p259) target = $region36
      $region35: #{darknet_forward.8} parent=31 // pred_region
        %262 = vst [vmem:[#allocation2] sm:$0xff] 0.0
        %263 = vst [vmem:[#allocation2 + $0x8] sm:$0xff] 0.0
        %264 = vst [vmem:[#allocation2 + $0x10] sm:$0xff] 0.0
        %265 = vst [vmem:[#allocation2 + $0x18] sm:$0xff] 0.0
        %266 = vst [vmem:[#allocation2 + $0x20] sm:$0xff] 0.0
        %267 = vst [vmem:[#allocation2 + $0x28] sm:$0xff] 0.0
        %268 = vst [vmem:[#allocation2 + $0x30] sm:$0xff] 0.0
        %269 = vst [vmem:[#allocation2 + $0x38] sm:$0xff] 0.0
      $region36: #{darknet_forward.8} parent=31 // pred_fallthru
        _
      %v270 = vld [vmem:[#allocation2] sm:$0xff]
      %v271 = vld [vmem:[#allocation2 + $0x8] sm:$0xff]
      %v272 = vld [vmem:[#allocation2 + $0x10] sm:$0xff]
      %v273 = vld [vmem:[#allocation2 + $0x18] sm:$0xff]
      %v274 = vld [vmem:[#allocation2 + $0x20] sm:$0xff]
      %v275 = vld [vmem:[#allocation2 + $0x28] sm:$0xff]
      %v276 = vld [vmem:[#allocation2 + $0x30] sm:$0xff]
      %v277 = vld [vmem:[#allocation2 + $0x38] sm:$0xff]
      %v278 = vld [vmem:[%s236] sm:$0xf]
      %v279 = vld [vmem:[%s236 + $0x4] sm:$0xf]
      %v280 = vld [vmem:[%s236 + $0x8] sm:$0xf]
      %v281 = vld [vmem:[%s236 + $0xc] sm:$0xf]
      %v282 = vld [vmem:[%s236 + $0x10] sm:$0xf]
      %v283 = vld [vmem:[%s236 + $0x14] sm:$0xf]
      %v284 = vld [vmem:[%s236 + $0x18] sm:$0xf]
      %v285 = vld [vmem:[%s236 + $0x1c] sm:$0xf]
      %v286 = vld [vmem:[%s244] sm:$0xf]
      %v295 = vunpack.c.l.b16 %v278
      %v296 = vunpack.c.l.b16 %v279
      %v297 = vunpack.c.l.b16 %v280
      %v298 = vunpack.c.l.b16 %v281
      %v299 = vunpack.c.l.b16 %v282
      %v300 = vunpack.c.l.b16 %v283
      %v301 = vunpack.c.l.b16 %v284
      %v302 = vunpack.c.l.b16 %v285
      %v303 = vpack.c.b16 %v296, %v295
      %v304 = vpack.c.b16 %v298, %v297
      %v305 = vpack.c.b16 %v300, %v299
      %v306 = vpack.c.b16 %v302, %v301
      %vm307 = vcmask 64512
      %v309 = vsel %vm307, %v303, 0
      %v312 = vsel %vm307, %v304, 0
      %v315 = vsel %vm307, %v305, 0
      %v318 = vsel %vm307, %v306, 0
      %vm320 = vcmask 1043456
      %v322 = vsel %vm320, %v286, 0
      %324 = vmatprep.subr.bf16.mxu0 0
      %325 = vmatpush1.bf16.msra.mxu0 0
      %326 = vmatprep.subr.bf16.mxu0 0
      %327 = vmatpush1.bf16.msra.mxu0 0
      %328 = vmatprep.subr.bf16.mxu0 0
      %329 = vmatpush1.bf16.msra.mxu0 0
      %330 = vmatprep.subr.bf16.mxu0 0
      %331 = vmatpush1.bf16.msra.mxu0 0
      %332 = vmatprep.subr.bf16.mxu0 0
      %333 = vmatpush1.bf16.msra.mxu0 0
      %334 = vmatprep.subr.bf16.mxu0 0
      %335 = vmatpush1.bf16.msra.mxu0 0
      %336 = vmatprep.subr.bf16.mxu0 0
      %337 = vmatpush1.bf16.msra.mxu0 0
      %338 = vmatprep.subr.bf16.mxu0 0
      %339 = vmatpush1.bf16.msra.mxu0 %v322
      %340 = vmatprep.subr.bf16.mxu0 0
      %341 = vmatpush2.bf16.msra.mxu0 0
      %342 = vmatprep.subr.bf16.mxu0 0
      %343 = vmatpush2.bf16.msra.mxu0 0
      %344 = vmatprep.subr.bf16.mxu0 0
      %345 = vmatpush2.bf16.msra.mxu0 0
      %346 = vmatprep.subr.bf16.mxu0 0
      %347 = vmatpush2.bf16.msra.mxu0 0
      %348 = vmatprep.subr.bf16.mxu0 0
      %349 = vmatpush2.bf16.msra.mxu0 0
      %350 = vmatprep.subr.bf16.mxu0 0
      %351 = vmatpush2.bf16.msra.mxu0 0
      %352 = vmatprep.subr.bf16.mxu0 0
      %353 = vmatpush2.bf16.msra.mxu0 0
      %354 = vmatprep.subr.bf16.mxu0 0
      %355 = vmatpush2.bf16.msra.mxu0 0
      %356 = vmatprep.mubr.bf16.mxu0 0
      %357 = vmatmul.mubr.bf16.gmra.mxu0 %v309
      %v358 = vpop.f32.mrf.mxu0
      %v359 = vadd.f32 0.0, %v358
      %v360 = vpop.f32.mrf.mxu0
      %v361 = vpop.f32.mrf.mxu0
      %v362 = vadd.f32 0.0, %v361
      %v363 = vpop.f32.mrf.mxu0
      %364 = vmatprep.mubr.bf16.mxu0 0
      %365 = vmatmul.mubr.bf16.gmra.mxu0 %v312
      %v366 = vpop.f32.mrf.mxu0
      %v367 = vadd.f32 0.0, %v366
      %v368 = vpop.f32.mrf.mxu0
      %v369 = vpop.f32.mrf.mxu0
      %v370 = vadd.f32 0.0, %v369
      %v371 = vpop.f32.mrf.mxu0
      %372 = vmatprep.mubr.bf16.mxu0 0
      %373 = vmatmul.mubr.bf16.gmra.mxu0 %v315
      %v374 = vpop.f32.mrf.mxu0
      %v375 = vadd.f32 0.0, %v374
      %v376 = vpop.f32.mrf.mxu0
      %v377 = vpop.f32.mrf.mxu0
      %v378 = vadd.f32 0.0, %v377
      %v379 = vpop.f32.mrf.mxu0
      %380 = vmatprep.mubr.bf16.mxu0 0
      %381 = vmatmul.mubr.bf16.gmra.mxu0 %v318
      %v382 = vpop.f32.mrf.mxu0
      %v383 = vadd.f32 0.0, %v382
      %v384 = vpop.f32.mrf.mxu0
      %v385 = vpop.f32.mrf.mxu0
      %v386 = vadd.f32 0.0, %v385
      %v387 = vpop.f32.mrf.mxu0
      %388 = vdwg.mxu0
      %v389 = vadd.f32 %v270, %v359
      %v390 = vadd.f32 %v271, %v362
      %v391 = vadd.f32 %v272, %v367
      %v392 = vadd.f32 %v273, %v370
      %v393 = vadd.f32 %v274, %v375
      %v394 = vadd.f32 %v275, %v378
      %v395 = vadd.f32 %v276, %v383
      %v396 = vadd.f32 %v277, %v386
      %397 = vst [vmem:[#allocation2] sm:$0xff] %v389
      %398 = vst [vmem:[#allocation2 + $0x8] sm:$0xff] %v390
      %399 = vst [vmem:[#allocation2 + $0x10] sm:$0xff] %v391
      %400 = vst [vmem:[#allocation2 + $0x18] sm:$0xff] %v392
      %401 = vst [vmem:[#allocation2 + $0x20] sm:$0xff] %v393
      %402 = vst [vmem:[#allocation2 + $0x28] sm:$0xff] %v394
      %403 = vst [vmem:[#allocation2 + $0x30] sm:$0xff] %v395
      %404 = vst [vmem:[#allocation2 + $0x38] sm:$0xff] %v396
      %p405 = scmp.eq.s32.totalorder %s21, 8
      // Predicated region
      $region37: #{darknet_forward.8} parent=31 // pred_check
        %p406 = pneg %p405
      $region38: #{darknet_forward.8} parent=31 // pred_check_branch
        %408 = sbr.rel (%p406) target = $region40
      $region39: #{darknet_forward.8} parent=31 // pred_region
        %v409 = vld [vmem:[#allocation2] sm:$0xff]
        %v410 = vld [vmem:[#allocation2 + $0x8] sm:$0xff]
        %v411 = vld [vmem:[#allocation2 + $0x10] sm:$0xff]
        %v412 = vld [vmem:[#allocation2 + $0x18] sm:$0xff]
        %v413 = vld [vmem:[#allocation2 + $0x20] sm:$0xff]
        %v414 = vld [vmem:[#allocation2 + $0x28] sm:$0xff]
        %v415 = vld [vmem:[#allocation2 + $0x30] sm:$0xff]
        %v416 = vld [vmem:[#allocation2 + $0x38] sm:$0xff]
        %v417 = vld [vmem:[%s247] sm:$0x1]
        %v419 = vlaneseq
        %v420 = vshrl.u32 %v419, 7
        %v421 = vsub.s32 0, %v420
        %v422 = vrot.slane %v417, %v421
        %v424 = vadd.f32 %v409, %v422
        %v425 = vadd.f32 %v410, %v422
        %v426 = vadd.f32 %v411, %v422
        %v427 = vadd.f32 %v412, %v422
        %v428 = vadd.f32 %v413, %v422
        %v429 = vadd.f32 %v414, %v422
        %v430 = vadd.f32 %v415, %v422
        %v431 = vadd.f32 %v416, %v422
        %vm432 = vcmp.ge.f32.partialorder %v424, 0.0
        %vm433 = vcmp.ge.f32.partialorder %v425, 0.0
        %vm434 = vcmp.ge.f32.partialorder %v426, 0.0
        %vm435 = vcmp.ge.f32.partialorder %v427, 0.0
        %vm436 = vcmp.ge.f32.partialorder %v428, 0.0
        %vm437 = vcmp.ge.f32.partialorder %v429, 0.0
        %vm438 = vcmp.ge.f32.partialorder %v430, 0.0
        %vm439 = vcmp.ge.f32.partialorder %v431, 0.0
        %v440 = vmul.f32 %v424, 0.1
        %v441 = vmul.f32 %v425, 0.1
        %v442 = vmul.f32 %v426, 0.1
        %v443 = vmul.f32 %v427, 0.1
        %v444 = vmul.f32 %v428, 0.1
        %v445 = vmul.f32 %v429, 0.1
        %v446 = vmul.f32 %v430, 0.1
        %v447 = vmul.f32 %v431, 0.1
        %v448 = vsel %vm432, %v424, %v440
        %v449 = vsel %vm433, %v425, %v441
        %v450 = vsel %vm434, %v426, %v442
        %v451 = vsel %vm435, %v427, %v443
        %v452 = vsel %vm436, %v428, %v444
        %v453 = vsel %vm437, %v429, %v445
        %v454 = vsel %vm438, %v430, %v446
        %v455 = vsel %vm439, %v431, %v447
        %v456 = vpack.c.bf16 %v449, %v448
        %v457 = vpack.c.bf16 %v451, %v450
        %v458 = vpack.c.bf16 %v453, %v452
        %v459 = vpack.c.bf16 %v455, %v454
        %v464 = vunpack.c.l.b16 %v456
        %v465 = vunpack.c.h.b16 %v456
        %v466 = vunpack.c.l.b16 %v457
        %v467 = vunpack.c.h.b16 %v457
        %v468 = vunpack.c.l.b16 %v458
        %v469 = vunpack.c.h.b16 %v458
        %v470 = vunpack.c.l.b16 %v459
        %v471 = vunpack.c.h.b16 %v459
        %v472 = vpack.c.b16 %v464, %v464
        %v473 = vpack.c.b16 %v465, %v465
        %v474 = vpack.c.b16 %v466, %v466
        %v475 = vpack.c.b16 %v467, %v467
        %v476 = vpack.c.b16 %v468, %v468
        %v477 = vpack.c.b16 %v469, %v469
        %v478 = vpack.c.b16 %v470, %v470
        %v479 = vpack.c.b16 %v471, %v471
        %488 = vst [vmem:[%s255] sm:$0xf] %v472
        %489 = vst [vmem:[%s255 + $0x4] sm:$0xf] %v473
        %490 = vst [vmem:[%s255 + $0x8] sm:$0xf] %v474
        %491 = vst [vmem:[%s255 + $0xc] sm:$0xf] %v475
        %492 = vst [vmem:[%s255 + $0x10] sm:$0xf] %v476
        %493 = vst [vmem:[%s255 + $0x14] sm:$0xf] %v477
        %494 = vst [vmem:[%s255 + $0x18] sm:$0xf] %v478
        %495 = vst [vmem:[%s255 + $0x1c] sm:$0xf] %v479
      $region40: #{darknet_forward.8} parent=31 // pred_fallthru
        _
      %s496 = smul.u32 8, %s19
      %p497 = scmp.lt.s32.totalorder %s496, 15
      %s498 = scalar_select %p497, %s496, 15
      %p499 = scmp.lt.s32.totalorder %s20, 0
      %s500 = scalar_select %p499, %s20, 0
      %s501 = sadd.s32 %s500, %s498
      %s502 = smul.addr %s501, 4
      %s503 = scalar_lea.vmem %s3, %s502
      // Predicated region
      $region41: #{darknet_forward.8} parent=31 // pred_check
        %p504 = pneg %p135
      $region42: #{darknet_forward.8} parent=31 // pred_check_branch
        %506 = sbr.rel (%p504) target = $region44
      $region43: #{darknet_forward.8} parent=31 // pred_region
        %s507 = smul.u32 8, %s19
      $region44: #{darknet_forward.8} parent=31 // pred_fallthru
        _
    $region32: #{darknet_forward.8} parent=5 // pred_fallthru
      _
    %p508 = scmp.le.s32.totalorder 2, %s9
    // Predicated region
    $region45: #{darknet_forward.8} parent=5 // pred_check
      %p509 = pneg %p508
    $region46: #{darknet_forward.8} parent=5 // pred_check_branch
      %511 = sbr.rel (%p509) target = $region48
    $region47: #{darknet_forward.8} parent=5 // pred_region
      %s512 = ssub.s32 %s9, 2
      // Predicated region
      $region49: #{darknet_forward.8} parent=47 // pred_check
        %p513 = pneg %p141
      $region50: #{darknet_forward.8} parent=47 // pred_check_branch
        %515 = sbr.rel (%p513) target = $region52
      $region51: #{darknet_forward.8} parent=47 // pred_region
        %s516 = smul.u32 8, %s22
        %p517 = scmp.lt.s32.totalorder %s516, 15
        %s518 = scalar_select %p517, %s516, 15
        %p519 = scmp.lt.s32.totalorder %s23, 0
        %s520 = scalar_select %p519, %s23, 0
        %s521 = sadd.s32 %s520, %s518
        %s522 = smul.addr %s521, 4
        %s523 = scalar_lea.vmem %s3, %s522
      $region52: #{darknet_forward.8} parent=47 // pred_fallthru
        _
    $region48: #{darknet_forward.8} parent=5 // pred_fallthru
      _
  $region6: #{darknet_forward.8} parent=0 // loop_footer
    %s13 = sadd.s32 1, %s9
  $region7: #{darknet_forward.8} parent=0 // loop_footer_branch
    %8 = sbr.rel target = $region3
  $region8: #{darknet_forward.8} parent=0 // loop_exit
    _

// kernel: darknet_forward.9
$region0: #{darknet_forward.9}
  #allocation0 [shape = 'u32[]', space=smem, size = 0x4, offset = 0x4, fixed_abs, tag = 'smem constant byte address 0x4 - core index']
  #allocation1 [shape = 'u32[144,128]{1,0:T(1,128)}', space=vmem, size = 0x12000, scoped, tag = 'internal scratch']
  #allocation2 [shape = 'f32[64,128]{1,0:T(8,128)}', space=vmem, size = 0x8000, scoped, tag = 'scratch operand']
  %s0 = inlined_call_operand.vmem [shape: bf16[1,128,16], index: 0, kind: input, shape index: {}]
  %s1 = inlined_call_operand.vmem [shape: bf16[1,16,128], index: 1, kind: input, shape index: {}]
  %s2 = inlined_call_operand.vmem [shape: f32[1,128], index: 2, kind: input, shape index: {}]
  %s3 = inlined_call_operand.vmem [shape: bf16[128,128], index: 3, kind: output, shape index: {}]
  %s4 = sld [smem:[#allocation0]]
  $region53: #{darknet_forward.9} parent=0
    _
  %s6 = ssub.s32 1, %s4
  %s7 = scalar_select 0, %s6, %s4
  loop: start=0, step=1, limit=4
  $region2: #{darknet_forward.9} parent=0 // loop_pre_header
    _
  $region3: #{darknet_forward.9} parent=0 // loop_header
    %s9 = sphi 0, %s13
    %p10 = scmp.ge.s32.totalorder %s9, 4
    %s16 = sphi 0, %s35
    %s17 = sphi 0, %s31
    %s18 = sphi 0, %s27
    %s19 = sphi 0, %s16
    %s20 = sphi 0, %s17
    %s21 = sphi 0, %s18
    %s22 = sphi 0, %s19
    %s23 = sphi 0, %s20
    %s24 = sphi 0, %s21
    %s40 = sphi 0, %s42
    %s43 = sphi 0, %s40
    %s44 = sphi 0, %s43
    %s60 = sphi 0, %s44
    %s68 = sphi 0, %s70
    %s71 = sphi 0, %s68
    %s72 = sphi 0, %s71
    %s88 = sphi 0, %s72
    %s94 = sphi 0, %s96
    %s97 = sphi 0, %s94
    %s98 = sphi 0, %s97
    %s114 = sphi 0, %s98
    %s122 = sphi 0, %s124
    %s125 = sphi 0, %s122
    %s126 = sphi 0, %s125
    %s142 = sphi 0, %s126
  $region4: #{darknet_forward.9} parent=0 // loop_header_branch
    %12 = sbr.rel (%p10) target = $region8
  $region5: #{darknet_forward.9} parent=0 // loop_body
    %s14 = ssub.s32 %s9, 1
    %s15 = ssub.s32 %s9, 2
    %s25 = sadd.s32 1, %s18
    %p26 = scmp.ge.s32.totalorder %s25, 1
    %s27 = scalar_select %p26, 0, %s25
    %s28 = sadd.s32 1, %s17
    %s29 = scalar_select %p26, %s28, %s17
    %p30 = scmp.ge.s32.totalorder %s29, 1
    %s31 = scalar_select %p30, 0, %s29
    %s32 = sadd.s32 1, %s16
    %s33 = scalar_select %p30, %s32, %s16
    %p34 = scmp.ge.s32.totalorder %s33, 2
    %s35 = scalar_select %p34, 0, %s33
    %s36 = ssub.s32 %s18, %s27
    %s37 = ssub.s32 %s16, %s35
    %s38 = sor.u32 %s36, %s37
    %p39 = scmp.eq.s32.totalorder %s38, 0
    %s41 = sadd.s32 %s40, 1
    %s42 = scalar_select %p39, %s40, %s41
    %p45 = pneg %p39
    %p46 = scmp.eq.s32.totalorder %s9, 1
    %p47 = por %p45, %p46
    %p48 = scmp.ne.s32.totalorder %s40, %s43
    %p49 = scmp.eq.s32.totalorder %s9, 0
    %p50 = por %p48, %p49
    %p51 = scmp.ne.s32.totalorder %s40, %s43
    %p52 = scmp.eq.s32.totalorder %s14, 1
    %p53 = por %p51, %p52
    %p54 = scmp.ne.s32.totalorder %s43, %s44
    %p55 = scmp.eq.s32.totalorder %s14, 0
    %p56 = por %p54, %p55
    %p57 = scmp.ne.s32.totalorder %s43, %s44
    %p58 = scmp.eq.s32.totalorder %s15, 1
    %p59 = por %p57, %p58
    %p61 = scmp.ne.s32.totalorder %s44, %s60
    %p62 = scmp.eq.s32.totalorder %s15, 0
    %p63 = por %p61, %p62
    %s64 = ssub.s32 %s18, %s27
    %s65 = ssub.s32 %s17, %s31
    %s66 = sor.u32 %s64, %s65
    %p67 = scmp.eq.s32.totalorder %s66, 0
    %s69 = sadd.s32 %s68, 1
    %s70 = scalar_select %p67, %s68, %s69
    %p73 = pneg %p67
    %p74 = scmp.eq.s32.totalorder %s9, 1
    %p75 = por %p73, %p74
    %p76 = scmp.ne.s32.totalorder %s68, %s71
    %p77 = scmp.eq.s32.totalorder %s9, 0
    %p78 = por %p76, %p77
    %p79 = scmp.ne.s32.totalorder %s68, %s71
    %p80 = scmp.eq.s32.totalorder %s14, 1
    %p81 = por %p79, %p80
    %p82 = scmp.ne.s32.totalorder %s71, %s72
    %p83 = scmp.eq.s32.totalorder %s14, 0
    %p84 = por %p82, %p83
    %p85 = scmp.ne.s32.totalorder %s71, %s72
    %p86 = scmp.eq.s32.totalorder %s15, 1
    %p87 = por %p85, %p86
    %p89 = scmp.ne.s32.totalorder %s72, %s88
    %p90 = scmp.eq.s32.totalorder %s15, 0
    %p91 = por %p89, %p90
    %s92 = ssub.s32 %s17, %s31
    %p93 = scmp.eq.s32.totalorder %s92, 0
    %s95 = sadd.s32 %s94, 1
    %s96 = scalar_select %p93, %s94, %s95
    %p99 = pneg %p93
    %p100 = scmp.eq.s32.totalorder %s9, 1
    %p101 = por %p99, %p100
    %p102 = scmp.ne.s32.totalorder %s94, %s97
    %p103 = scmp.eq.s32.totalorder %s9, 0
    %p104 = por %p102, %p103
    %p105 = scmp.ne.s32.totalorder %s94, %s97
    %p106 = scmp.eq.s32.totalorder %s14, 1
    %p107 = por %p105, %p106
    %p108 = scmp.ne.s32.totalorder %s97, %s98
    %p109 = scmp.eq.s32.totalorder %s14, 0
    %p110 = por %p108, %p109
    %p111 = scmp.ne.s32.totalorder %s97, %s98
    %p112 = scmp.eq.s32.totalorder %s15, 1
    %p113 = por %p111, %p112
    %p115 = scmp.ne.s32.totalorder %s98, %s114
    %p116 = scmp.eq.s32.totalorder %s15, 0
    %p117 = por %p115, %p116
    %s118 = ssub.s32 %s16, %s35
    %s119 = ssub.s32 %s17, %s31
    %s120 = sor.u32 %s118, %s119
    %p121 = scmp.eq.s32.totalorder %s120, 0
    %s123 = sadd.s32 %s122, 1
    %s124 = scalar_select %p121, %s122, %s123
    %p127 = pneg %p121
    %p128 = scmp.eq.s32.totalorder %s9, 1
    %p129 = por %p127, %p128
    %p130 = scmp.ne.s32.totalorder %s122, %s125
    %p131 = scmp.eq.s32.totalorder %s9, 0
    %p132 = por %p130, %p131
    %p133 = scmp.ne.s32.totalorder %s122, %s125
    %p134 = scmp.eq.s32.totalorder %s14, 1
    %p135 = por %p133, %p134
    %p136 = scmp.ne.s32.totalorder %s125, %s126
    %p137 = scmp.eq.s32.totalorder %s14, 0
    %p138 = por %p136, %p137
    %p139 = scmp.ne.s32.totalorder %s125, %s126
    %p140 = scmp.eq.s32.totalorder %s15, 1
    %p141 = por %p139, %p140
    %p143 = scmp.ne.s32.totalorder %s126, %s142
    %p144 = scmp.eq.s32.totalorder %s15, 0
    %p145 = por %p143, %p144
    %p146 = scmp.le.s32.totalorder 1, %s9
    %p147 = scmp.lt.s32.totalorder %s9, 3
    %p148 = pnand %p146, %p147
    %p149 = pneg %p148
    // Predicated region
    $region9: #{darknet_forward.9} parent=5 // pred_check
      _
    $region10: #{darknet_forward.9} parent=5 // pred_check_branch
      %151 = sbr.rel (%p148) target = $region12
    $region11: #{darknet_forward.9} parent=5 // pred_region
      %s152 = ssub.s32 %s9, 1
      // Predicated region
      $region13: #{darknet_forward.9} parent=11 // pred_check
        %p153 = pneg %p84
      $region14: #{darknet_forward.9} parent=11 // pred_check_branch
        %155 = sbr.rel (%p153) target = $region16
      $region15: #{darknet_forward.9} parent=11 // pred_region
        %p156 = scmp.lt.s32.totalorder %s21, 0
        %s157 = scalar_select %p156, %s21, 0
        %p158 = scmp.lt.s32.totalorder %s20, 0
        %s159 = scalar_select %p158, %s20, 0
        %s160 = smul.addr %s157, 2
        %s161 = sadd.s32 %s159, %s160
        %s162 = smul.addr %s161, 4
        %s163 = scalar_lea.vmem %s1, %s162
      $region16: #{darknet_forward.9} parent=11 // pred_fallthru
        _
      // Predicated region
      $region17: #{darknet_forward.9} parent=11 // pred_check
        %p164 = pneg %p110
      $region18: #{darknet_forward.9} parent=11 // pred_check_branch
        %166 = sbr.rel (%p164) target = $region20
      $region19: #{darknet_forward.9} parent=11 // pred_region
        %p167 = scmp.lt.s32.totalorder %s20, 0
        %s168 = scalar_select %p167, %s20, 0
        %s169 = scalar_lea.vmem %s2, %s168
      $region20: #{darknet_forward.9} parent=11 // pred_fallthru
        _
    $region12: #{darknet_forward.9} parent=5 // pred_fallthru
      _
    %p170 = scmp.lt.s32.totalorder %s9, 2
    // Predicated region
    $region21: #{darknet_forward.9} parent=5 // pred_check
      %p171 = pneg %p170
    $region22: #{darknet_forward.9} parent=5 // pred_check_branch
      %173 = sbr.rel (%p171) target = $region24
    $region23: #{darknet_forward.9} parent=5 // pred_region
      // Predicated region
      $region25: #{darknet_forward.9} parent=23 // pred_check
        %p174 = pneg %p50
      $region26: #{darknet_forward.9} parent=23 // pred_check_branch
        %176 = sbr.rel (%p174) target = $region28
      $region27: #{darknet_forward.9} parent=23 // pred_region
        %s177 = smul.u32 8, %s16
        %p178 = scmp.lt.s32.totalorder %s18, 0
        %s179 = scalar_select %p178, %s18, 0
        %p180 = scmp.lt.s32.totalorder %s177, 15
        %s181 = scalar_select %p180, %s177, 15
        %s182 = smul.addr %s179, 16
        %s183 = sadd.s32 %s181, %s182
        %s184 = smul.addr %s183, 4
        %s185 = scalar_lea.vmem %s0, %s184
        %s186 = smul.u32 8, %s16
      $region28: #{darknet_forward.9} parent=23 // pred_fallthru
        _
    $region24: #{darknet_forward.9} parent=5 // pred_fallthru
      _
    %p187 = scmp.le.s32.totalorder 1, %s9
    %p188 = scmp.lt.s32.totalorder %s9, 3
    %p189 = pnand %p187, %p188
    %p190 = pneg %p189
    // Predicated region
    $region29: #{darknet_forward.9} parent=5 // pred_check
      _
    $region30: #{darknet_forward.9} parent=5 // pred_check_branch
      %192 = sbr.rel (%p189) target = $region32
    $region31: #{darknet_forward.9} parent=5 // pred_region
      %s193 = ssub.s32 %s9, 1
      %s194 = smul.u32 8, %s19
      %p195 = scmp.lt.s32.totalorder %s21, 0
      %s196 = scalar_select %p195, %s21, 0
      %p197 = scmp.lt.s32.totalorder %s194, 15
      %s198 = scalar_select %p197, %s194, 15
      %s199 = smul.addr %s196, 16
      %s200 = sadd.s32 %s198, %s199
      %s201 = smul.addr %s200, 4
      %s202 = scalar_lea.vmem %s0, %s201
      %p203 = pneg %p56
      %p204 = pneg %p53
      %p205 = scmp.lt.s32.totalorder %s21, 0
      %s206 = scalar_select %p205, %s21, 0
      %p207 = scmp.lt.s32.totalorder %s20, 0
      %s208 = scalar_select %p207, %s20, 0
      %s209 = smul.addr %s206, 2
      %s210 = sadd.s32 %s208, %s209
      %s211 = smul.addr %s210, 4
      %s212 = scalar_lea.vmem %s1, %s211
      %p213 = pneg %p84
      %p214 = pneg %p81
      %p215 = scmp.lt.s32.totalorder %s20, 0
      %s216 = scalar_select %p215, %s20, 0
      %s217 = scalar_lea.vmem %s2, %s216
      %p218 = pneg %p110
      %p219 = pneg %p107
      %p220 = pneg %p138
      %p221 = pneg %p135
      %s222 = smul.u32 8, %s19
      %p223 = scmp.lt.s32.totalorder %s222, 15
      %s224 = scalar_select %p223, %s222, 15
      %p225 = scmp.lt.s32.totalorder %s20, 0
      %s226 = scalar_select %p225, %s20, 0
      %s227 = sadd.s32 %s226, %s224
      %s228 = smul.addr %s227, 4
      %s229 = scalar_lea.vmem %s3, %s228
      %s230 = smul.u32 8, %s19
      %p231 = scmp.lt.s32.totalorder %s21, 0
      %s232 = scalar_select %p231, %s21, 0
      %p233 = scmp.lt.s32.totalorder %s230, 15
      %s234 = scalar_select %p233, %s230, 15
      %s235 = smul.addr %s232, 16
      %s236 = sadd.s32 %s234, %s235
      %s237 = smul.addr %s236, 4
      %s238 = scalar_lea.vmem %s0, %s237
      %s239 = smul.u32 8, %s19
      %p240 = scmp.lt.s32.totalorder %s21, 0
      %s241 = scalar_select %p240, %s21, 0
      %p242 = scmp.lt.s32.totalorder %s20, 0
      %s243 = scalar_select %p242, %s20, 0
      %s244 = smul.addr %s241, 2
      %s245 = sadd.s32 %s243, %s244
      %s246 = smul.addr %s245, 4
      %s247 = scalar_lea.vmem %s1, %s246
      %p248 = scmp.lt.s32.totalorder %s20, 0
      %s249 = scalar_select %p248, %s20, 0
      %s250 = scalar_lea.vmem %s2, %s249
      %s251 = smul.u32 8, %s19
      %p252 = scmp.lt.s32.totalorder %s251, 15
      %s253 = scalar_select %p252, %s251, 15
      %p254 = scmp.lt.s32.totalorder %s20, 0
      %s255 = scalar_select %p254, %s20, 0
      %s256 = sadd.s32 %s255, %s253
      %s257 = smul.addr %s256, 4
      %s258 = scalar_lea.vmem %s3, %s257
      %s259 = smul.u32 8, %s19
      %p261 = scmp.eq.s32.totalorder %s21, 0
      // Predicated region
      $region33: #{darknet_forward.9} parent=31 // pred_check
        %p262 = pneg %p261
      $region34: #{darknet_forward.9} parent=31 // pred_check_branch
        %264 = sbr.rel (%p262) target = $region36
      $region35: #{darknet_forward.9} parent=31 // pred_region
        %265 = vst [vmem:[#allocation2] sm:$0xff] 0.0
        %266 = vst [vmem:[#allocation2 + $0x8] sm:$0xff] 0.0
        %267 = vst [vmem:[#allocation2 + $0x10] sm:$0xff] 0.0
        %268 = vst [vmem:[#allocation2 + $0x18] sm:$0xff] 0.0
        %269 = vst [vmem:[#allocation2 + $0x20] sm:$0xff] 0.0
        %270 = vst [vmem:[#allocation2 + $0x28] sm:$0xff] 0.0
        %271 = vst [vmem:[#allocation2 + $0x30] sm:$0xff] 0.0
        %272 = vst [vmem:[#allocation2 + $0x38] sm:$0xff] 0.0
      $region36: #{darknet_forward.9} parent=31 // pred_fallthru
        _
      %v273 = vld [vmem:[#allocation2] sm:$0xff]
      %v274 = vld [vmem:[#allocation2 + $0x8] sm:$0xff]
      %v275 = vld [vmem:[#allocation2 + $0x10] sm:$0xff]
      %v276 = vld [vmem:[#allocation2 + $0x18] sm:$0xff]
      %v277 = vld [vmem:[#allocation2 + $0x20] sm:$0xff]
      %v278 = vld [vmem:[#allocation2 + $0x28] sm:$0xff]
      %v279 = vld [vmem:[#allocation2 + $0x30] sm:$0xff]
      %v280 = vld [vmem:[#allocation2 + $0x38] sm:$0xff]
      %v281 = vld [vmem:[%s238] sm:$0xf]
      %v282 = vld [vmem:[%s238 + $0x4] sm:$0xf]
      %v283 = vld [vmem:[%s238 + $0x8] sm:$0xf]
      %v284 = vld [vmem:[%s238 + $0xc] sm:$0xf]
      %v285 = vld [vmem:[%s238 + $0x10] sm:$0xf]
      %v286 = vld [vmem:[%s238 + $0x14] sm:$0xf]
      %v287 = vld [vmem:[%s238 + $0x18] sm:$0xf]
      %v288 = vld [vmem:[%s238 + $0x1c] sm:$0xf]
      %v289 = vld [vmem:[%s247] sm:$0xf]
      %v290 = vld [vmem:[%s247 + $0x4] sm:$0xf]
      %v299 = vunpack.c.l.b16 %v281
      %v300 = vunpack.c.l.b16 %v282
      %v301 = vunpack.c.l.b16 %v283
      %v302 = vunpack.c.l.b16 %v284
      %v303 = vunpack.c.l.b16 %v285
      %v304 = vunpack.c.l.b16 %v286
      %v305 = vunpack.c.l.b16 %v287
      %v306 = vunpack.c.l.b16 %v288
      %v307 = vpack.c.b16 %v300, %v299
      %v308 = vpack.c.b16 %v302, %v301
      %v309 = vpack.c.b16 %v304, %v303
      %v310 = vpack.c.b16 %v306, %v305
      %v313 = vunpack.c.l.b16 %v289
      %v314 = vunpack.c.l.b16 %v290
      %v315 = vpack.c.b16 %v314, %v313
      %vm317 = vcmask 130048
      %v319 = vsel %vm317, %v307, 0
      %v322 = vsel %vm317, %v308, 0
      %v325 = vsel %vm317, %v309, 0
      %v328 = vsel %vm317, %v310, 0
      %330 = vmatprep.subr.bf16.mxu0 0
      %331 = vmatpush1.bf16.msra.mxu0 0
      %332 = vmatprep.subr.bf16.mxu0 0
      %333 = vmatpush1.bf16.msra.mxu0 0
      %334 = vmatprep.subr.bf16.mxu0 0
      %335 = vmatpush1.bf16.msra.mxu0 0
      %336 = vmatprep.subr.bf16.mxu0 0
      %337 = vmatpush1.bf16.msra.mxu0 0
      %338 = vmatprep.subr.bf16.mxu0 0
      %339 = vmatpush1.bf16.msra.mxu0 0
      %340 = vmatprep.subr.bf16.mxu0 0
      %341 = vmatpush1.bf16.msra.mxu0 0
      %342 = vmatprep.subr.bf16.mxu0 0
      %343 = vmatpush1.bf16.msra.mxu0 0
      %344 = vmatprep.subr.bf16.mxu0 0
      %345 = vmatpush1.bf16.msra.mxu0 %v315
      %346 = vmatprep.subr.bf16.mxu0 0
      %347 = vmatpush2.bf16.msra.mxu0 0
      %348 = vmatprep.subr.bf16.mxu0 0
      %349 = vmatpush2.bf16.msra.mxu0 0
      %350 = vmatprep.subr.bf16.mxu0 0
      %351 = vmatpush2.bf16.msra.mxu0 0
      %352 = vmatprep.subr.bf16.mxu0 0
      %353 = vmatpush2.bf16.msra.mxu0 0
      %354 = vmatprep.subr.bf16.mxu0 0
      %355 = vmatpush2.bf16.msra.mxu0 0
      %356 = vmatprep.subr.bf16.mxu0 0
      %357 = vmatpush2.bf16.msra.mxu0 0
      %358 = vmatprep.subr.bf16.mxu0 0
      %359 = vmatpush2.bf16.msra.mxu0 0
      %360 = vmatprep.subr.bf16.mxu0 0
      %361 = vmatpush2.bf16.msra.mxu0 0
      %362 = vmatprep.mubr.bf16.mxu0 0
      %363 = vmatmul.mubr.bf16.gmra.mxu0 %v319
      %v364 = vpop.f32.mrf.mxu0
      %v365 = vadd.f32 0.0, %v364
      %v366 = vpop.f32.mrf.mxu0
      %v367 = vpop.f32.mrf.mxu0
      %v368 = vadd.f32 0.0, %v367
      %v369 = vpop.f32.mrf.mxu0
      %370 = vmatprep.mubr.bf16.mxu0 0
      %371 = vmatmul.mubr.bf16.gmra.mxu0 %v322
      %v372 = vpop.f32.mrf.mxu0
      %v373 = vadd.f32 0.0, %v372
      %v374 = vpop.f32.mrf.mxu0
      %v375 = vpop.f32.mrf.mxu0
      %v376 = vadd.f32 0.0, %v375
      %v377 = vpop.f32.mrf.mxu0
      %378 = vmatprep.mubr.bf16.mxu0 0
      %379 = vmatmul.mubr.bf16.gmra.mxu0 %v325
      %v380 = vpop.f32.mrf.mxu0
      %v381 = vadd.f32 0.0, %v380
      %v382 = vpop.f32.mrf.mxu0
      %v383 = vpop.f32.mrf.mxu0
      %v384 = vadd.f32 0.0, %v383
      %v385 = vpop.f32.mrf.mxu0
      %386 = vmatprep.mubr.bf16.mxu0 0
      %387 = vmatmul.mubr.bf16.gmra.mxu0 %v328
      %v388 = vpop.f32.mrf.mxu0
      %v389 = vadd.f32 0.0, %v388
      %v390 = vpop.f32.mrf.mxu0
      %v391 = vpop.f32.mrf.mxu0
      %v392 = vadd.f32 0.0, %v391
      %v393 = vpop.f32.mrf.mxu0
      %394 = vdwg.mxu0
      %v395 = vadd.f32 %v273, %v365
      %v396 = vadd.f32 %v274, %v368
      %v397 = vadd.f32 %v275, %v373
      %v398 = vadd.f32 %v276, %v376
      %v399 = vadd.f32 %v277, %v381
      %v400 = vadd.f32 %v278, %v384
      %v401 = vadd.f32 %v279, %v389
      %v402 = vadd.f32 %v280, %v392
      %403 = vst [vmem:[#allocation2] sm:$0xff] %v395
      %404 = vst [vmem:[#allocation2 + $0x8] sm:$0xff] %v396
      %405 = vst [vmem:[#allocation2 + $0x10] sm:$0xff] %v397
      %406 = vst [vmem:[#allocation2 + $0x18] sm:$0xff] %v398
      %407 = vst [vmem:[#allocation2 + $0x20] sm:$0xff] %v399
      %408 = vst [vmem:[#allocation2 + $0x28] sm:$0xff] %v400
      %409 = vst [vmem:[#allocation2 + $0x30] sm:$0xff] %v401
      %410 = vst [vmem:[#allocation2 + $0x38] sm:$0xff] %v402
      // Predicated region
      $region37: #{darknet_forward.9} parent=31 // pred_check
        %p411 = pneg %p261
      $region38: #{darknet_forward.9} parent=31 // pred_check_branch
        %413 = sbr.rel (%p411) target = $region40
      $region39: #{darknet_forward.9} parent=31 // pred_region
        %v414 = vld [vmem:[#allocation2] sm:$0xff]
        %v415 = vld [vmem:[#allocation2 + $0x8] sm:$0xff]
        %v416 = vld [vmem:[#allocation2 + $0x10] sm:$0xff]
        %v417 = vld [vmem:[#allocation2 + $0x18] sm:$0xff]
        %v418 = vld [vmem:[#allocation2 + $0x20] sm:$0xff]
        %v419 = vld [vmem:[#allocation2 + $0x28] sm:$0xff]
        %v420 = vld [vmem:[#allocation2 + $0x30] sm:$0xff]
        %v421 = vld [vmem:[#allocation2 + $0x38] sm:$0xff]
        %v422 = vld [vmem:[%s250] sm:$0x1]
        %v424 = vlaneseq
        %v425 = vshrl.u32 %v424, 7
        %v426 = vsub.s32 0, %v425
        %v427 = vrot.slane %v422, %v426
        %v429 = vadd.f32 %v414, %v427
        %v430 = vadd.f32 %v415, %v427
        %v431 = vadd.f32 %v416, %v427
        %v432 = vadd.f32 %v417, %v427
        %v433 = vadd.f32 %v418, %v427
        %v434 = vadd.f32 %v419, %v427
        %v435 = vadd.f32 %v420, %v427
        %v436 = vadd.f32 %v421, %v427
        %vm437 = vcmp.ge.f32.partialorder %v429, 0.0
        %vm438 = vcmp.ge.f32.partialorder %v430, 0.0
        %vm439 = vcmp.ge.f32.partialorder %v431, 0.0
        %vm440 = vcmp.ge.f32.partialorder %v432, 0.0
        %vm441 = vcmp.ge.f32.partialorder %v433, 0.0
        %vm442 = vcmp.ge.f32.partialorder %v434, 0.0
        %vm443 = vcmp.ge.f32.partialorder %v435, 0.0
        %vm444 = vcmp.ge.f32.partialorder %v436, 0.0
        %v445 = vmul.f32 %v429, 0.1
        %v446 = vmul.f32 %v430, 0.1
        %v447 = vmul.f32 %v431, 0.1
        %v448 = vmul.f32 %v432, 0.1
        %v449 = vmul.f32 %v433, 0.1
        %v450 = vmul.f32 %v434, 0.1
        %v451 = vmul.f32 %v435, 0.1
        %v452 = vmul.f32 %v436, 0.1
        %v453 = vsel %vm437, %v429, %v445
        %v454 = vsel %vm438, %v430, %v446
        %v455 = vsel %vm439, %v431, %v447
        %v456 = vsel %vm440, %v432, %v448
        %v457 = vsel %vm441, %v433, %v449
        %v458 = vsel %vm442, %v434, %v450
        %v459 = vsel %vm443, %v435, %v451
        %v460 = vsel %vm444, %v436, %v452
        %v461 = vpack.c.bf16 %v454, %v453
        %v462 = vpack.c.bf16 %v456, %v455
        %v463 = vpack.c.bf16 %v458, %v457
        %v464 = vpack.c.bf16 %v460, %v459
        %v469 = vunpack.c.l.b16 %v461
        %v470 = vunpack.c.h.b16 %v461
        %v471 = vunpack.c.l.b16 %v462
        %v472 = vunpack.c.h.b16 %v462
        %v473 = vunpack.c.l.b16 %v463
        %v474 = vunpack.c.h.b16 %v463
        %v475 = vunpack.c.l.b16 %v464
        %v476 = vunpack.c.h.b16 %v464
        %v477 = vpack.c.b16 %v469, %v469
        %v478 = vpack.c.b16 %v470, %v470
        %v479 = vpack.c.b16 %v471, %v471
        %v480 = vpack.c.b16 %v472, %v472
        %v481 = vpack.c.b16 %v473, %v473
        %v482 = vpack.c.b16 %v474, %v474
        %v483 = vpack.c.b16 %v475, %v475
        %v484 = vpack.c.b16 %v476, %v476
        %493 = vst [vmem:[%s258] sm:$0xf] %v477
        %494 = vst [vmem:[%s258 + $0x4] sm:$0xf] %v478
        %495 = vst [vmem:[%s258 + $0x8] sm:$0xf] %v479
        %496 = vst [vmem:[%s258 + $0xc] sm:$0xf] %v480
        %497 = vst [vmem:[%s258 + $0x10] sm:$0xf] %v481
        %498 = vst [vmem:[%s258 + $0x14] sm:$0xf] %v482
        %499 = vst [vmem:[%s258 + $0x18] sm:$0xf] %v483
        %500 = vst [vmem:[%s258 + $0x1c] sm:$0xf] %v484
      $region40: #{darknet_forward.9} parent=31 // pred_fallthru
        _
      %s501 = smul.u32 8, %s19
      %p502 = scmp.lt.s32.totalorder %s501, 15
      %s503 = scalar_select %p502, %s501, 15
      %p504 = scmp.lt.s32.totalorder %s20, 0
      %s505 = scalar_select %p504, %s20, 0
      %s506 = sadd.s32 %s505, %s503
      %s507 = smul.addr %s506, 4
      %s508 = scalar_lea.vmem %s3, %s507
      // Predicated region
      $region41: #{darknet_forward.9} parent=31 // pred_check
        %p509 = pneg %p135
      $region42: #{darknet_forward.9} parent=31 // pred_check_branch
        %511 = sbr.rel (%p509) target = $region44
      $region43: #{darknet_forward.9} parent=31 // pred_region
        %s512 = smul.u32 8, %s19
      $region44: #{darknet_forward.9} parent=31 // pred_fallthru
        _
    $region32: #{darknet_forward.9} parent=5 // pred_fallthru
      _
    %p513 = scmp.le.s32.totalorder 2, %s9
    // Predicated region
    $region45: #{darknet_forward.9} parent=5 // pred_check
      %p514 = pneg %p513
    $region46: #{darknet_forward.9} parent=5 // pred_check_branch
      %516 = sbr.rel (%p514) target = $region48
    $region47: #{darknet_forward.9} parent=5 // pred_region
      %s517 = ssub.s32 %s9, 2
      // Predicated region
      $region49: #{darknet_forward.9} parent=47 // pred_check
        %p518 = pneg %p141
      $region50: #{darknet_forward.9} parent=47 // pred_check_branch
        %520 = sbr.rel (%p518) target = $region52
      $region51: #{darknet_forward.9} parent=47 // pred_region
        %s521 = smul.u32 8, %s22
        %p522 = scmp.lt.s32.totalorder %s521, 15
        %s523 = scalar_select %p522, %s521, 15
        %p524 = scmp.lt.s32.totalorder %s23, 0
        %s525 = scalar_select %p524, %s23, 0
        %s526 = sadd.s32 %s525, %s523
        %s527 = smul.addr %s526, 4
        %s528 = scalar_lea.vmem %s3, %s527
      $region52: #{darknet_forward.9} parent=47 // pred_fallthru
        _
    $region48: #{darknet_forward.9} parent=5 // pred_fallthru
      _
  $region6: #{darknet_forward.9} parent=0 // loop_footer
    %s13 = sadd.s32 1, %s9
  $region7: #{darknet_forward.9} parent=0 // loop_footer_branch
    %8 = sbr.rel target = $region3
  $region8: #{darknet_forward.9} parent=0 // loop_exit
    _

// kernel: darknet_forward.11
$region0: #{darknet_forward.11}
  #allocation0 [shape = 'u32[]', space=smem, size = 0x4, offset = 0x4, fixed_abs, tag = 'smem constant byte address 0x4 - core index']
  #allocation1 [shape = 'u32[144,128]{1,0:T(1,128)}', space=vmem, size = 0x12000, scoped, tag = 'internal scratch']
  %s0 = inlined_call_operand.vmem [shape: bf16[32,16], index: 0, kind: input, shape index: {}]
  %s1 = inlined_call_operand.vmem [shape: f32[2,32], index: 1, kind: input, shape index: {}]
  %s2 = inlined_call_operand.vmem [shape: f32[16,128], index: 2, kind: input, shape index: {}]
  %s3 = inlined_call_operand.vmem [shape: f32[1,128], index: 3, kind: input, shape index: {}]
  %s4 = inlined_call_operand.hbm [shape: f32[2,128], index: 4, kind: output, shape index: {}]
  %s5 = sld [smem:[#allocation0]]
  $region26: #{darknet_forward.11} parent=0
    _
  %s7 = ssub.s32 1, %s5
  %s8 = scalar_select 0, %s7, %s5
  $region1: #{darknet_forward.11} parent=0
    #allocation2 [shape = 'u8[1024]{0}', space=vmem, size = 0x400, scoped, tag = 'output window, operand 0, single buffered']
    #allocation3 [shape = 's32[1]{0}', space=sflag, size = 0x4, scoped, tag = 'scoped memory for darknet_forward.11']
    %9 = vsyncpa [#allocation3], 0
    // Predicated region
    $region2: #{darknet_forward.11} parent=1 // pred_check
      _
    $region3: #{darknet_forward.11} parent=1 // pred_check_branch
      %11 = sbr.rel (0) target = $region5
    $region4: #{darknet_forward.11} parent=1 // pred_region
      _
    $region5: #{darknet_forward.11} parent=1 // pred_fallthru
      _
    // Predicated region
    $region6: #{darknet_forward.11} parent=1 // pred_check
      _
    $region7: #{darknet_forward.11} parent=1 // pred_check_branch
      %13 = sbr.rel (0) target = $region9
    $region8: #{darknet_forward.11} parent=1 // pred_region
      _
    $region9: #{darknet_forward.11} parent=1 // pred_fallthru
      _
    // Predicated region
    $region10: #{darknet_forward.11} parent=1 // pred_check
      _
    $region11: #{darknet_forward.11} parent=1 // pred_check_branch
      %15 = sbr.rel (0) target = $region13
    $region12: #{darknet_forward.11} parent=1 // pred_region
      _
    $region13: #{darknet_forward.11} parent=1 // pred_fallthru
      _
    // Predicated region
    $region14: #{darknet_forward.11} parent=1 // pred_check
      _
    $region15: #{darknet_forward.11} parent=1 // pred_check_branch
      %17 = sbr.rel (0) target = $region17
    $region16: #{darknet_forward.11} parent=1 // pred_region
      _
    $region17: #{darknet_forward.11} parent=1 // pred_fallthru
      _
    %v18 = vld [vmem:[%s1] sm:$0x3]
    %v19 = vld [vmem:[%s0] sm:$0xf]
    %v20 = vld [vmem:[%s0 + $0x4] sm:$0xf]
    %v21 = vld [vmem:[%s0 + $0x8] sm:$0xf]
    %v22 = vld [vmem:[%s0 + $0xc] sm:$0xf]
    %v23 = vunpack.c.l.bf16 %v19
    %v24 = vunpack.c.l.bf16 %v20
    %v25 = vunpack.c.l.bf16 %v21
    %v26 = vunpack.c.l.bf16 %v22
    %vm27 = vcmask 261120
    %v29 = vsel %vm27, %v18, 0
    %31 = vmatprep.subr.mxu0 0.0
    %32 = vmatpush1.msra.mxu0 0.0
    %33 = vmatprep.subr.mxu0 0.0
    %34 = vmatpush1.msra.mxu0 0.0
    %35 = vmatprep.subr.mxu0 0.0
    %36 = vmatpush1.msra.mxu0 0.0
    %37 = vmatprep.subr.mxu0 0.0
    %38 = vmatpush1.msra.mxu0 0.0
    %39 = vmatprep.subr.mxu0 0.0
    %40 = vmatpush1.msra.mxu0 0.0
    %41 = vmatprep.subr.mxu0 0.0
    %42 = vmatpush1.msra.mxu0 0.0
    %43 = vmatprep.subr.mxu0 0.0
    %44 = vmatpush1.msra.mxu0 0.0
    %45 = vmatprep.subr.mxu0 0.0
    %46 = vmatpush1.msra.mxu0 0.0
    %47 = vmatprep.subr.mxu0 0.0
    %48 = vmatpush1.msra.mxu0 0.0
    %49 = vmatprep.subr.mxu0 0.0
    %50 = vmatpush1.msra.mxu0 0.0
    %51 = vmatprep.subr.mxu0 0.0
    %52 = vmatpush1.msra.mxu0 0.0
    %53 = vmatprep.subr.mxu0 0.0
    %54 = vmatpush1.msra.mxu0 0.0
    %55 = vmatprep.subr.mxu0 0.0
    %56 = vmatpush1.msra.mxu0 %v26
    %57 = vmatprep.subr.mxu0 0.0
    %58 = vmatpush1.msra.mxu0 %v25
    %59 = vmatprep.subr.mxu0 0.0
    %60 = vmatpush1.msra.mxu0 %v24
    %61 = vmatprep.subr.mxu0 0.0
    %62 = vmatpush1.msra.mxu0 %v23
    %63 = vmatprep.subr.mxu0 0.0
    %64 = vmatpush2.msra.mxu0 0.0
    %65 = vmatprep.subr.mxu0 0.0
    %66 = vmatpush2.msra.mxu0 0.0
    %67 = vmatprep.subr.mxu0 0.0
    %68 = vmatpush2.msra.mxu0 0.0
    %69 = vmatprep.subr.mxu0 0.0
    %70 = vmatpush2.msra.mxu0 0.0
    %71 = vmatprep.subr.mxu0 0.0
    %72 = vmatpush2.msra.mxu0 0.0
    %73 = vmatprep.subr.mxu0 0.0
    %74 = vmatpush2.msra.mxu0 0.0
    %75 = vmatprep.subr.mxu0 0.0
    %76 = vmatpush2.msra.mxu0 0.0
    %77 = vmatprep.subr.mxu0 0.0
    %78 = vmatpush2.msra.mxu0 0.0
    %79 = vmatprep.subr.mxu0 0.0
    %80 = vmatpush2.msra.mxu0 0.0
    %81 = vmatprep.subr.mxu0 0.0
    %82 = vmatpush2.msra.mxu0 0.0
    %83 = vmatprep.subr.mxu0 0.0
    %84 = vmatpush2.msra.mxu0 0.0
    %85 = vmatprep.subr.mxu0 0.0
    %86 = vmatpush2.msra.mxu0 0.0
    %87 = vmatprep.subr.mxu0 0.0
    %88 = vmatpush2.msra.mxu0 0.0
    %89 = vmatprep.subr.mxu0 0.0
    %90 = vmatpush2.msra.mxu0 0.0
    %91 = vmatprep.subr.mxu0 0.0
    %92 = vmatpush2.msra.mxu0 0.0
    %93 = vmatprep.subr.mxu0 0.0
    %94 = vmatpush2.msra.mxu0 0.0
    %95 = vmatprep.mubr.f32.mxu0 0.0
    %96 = vmatmul.mubr.f32.gmra.mxu0 %v29
    %v97 = vpop.f32.mrf.mxu0
    %v98 = vadd.f32 0.0, %v97
    %v99 = vpop.f32.mrf.mxu0
    %100 = vdwg.mxu0
    %v101 = vld [vmem:[%s2] sm:$0xff]
    %v102 = vld [vmem:[%s2 + $0x8] sm:$0xff]
    %v103 = vld [vmem:[%s3] sm:$0x1]
    %v105 = vlaneseq
    %v106 = vshrl.u32 %v105, 7
    %v107 = vsub.s32 0, %v106
    %v108 = vrot.slane %v103, %v107
    %vm110 = vcmask 130048
    %v112 = vsel %vm110, %v98, 0
    %114 = vmatprep.subr.mxu0 0.0
    %115 = vmatpush1.msra.mxu0 0.0
    %116 = vmatprep.subr.mxu0 0.0
    %117 = vmatpush1.msra.mxu0 0.0
    %118 = vmatprep.subr.mxu0 0.0
    %119 = vmatpush1.msra.mxu0 0.0
    %120 = vmatprep.subr.mxu0 0.0
    %121 = vmatpush1.msra.mxu0 0.0
    %122 = vmatprep.subr.mxu0 0.0
    %123 = vmatpush1.msra.mxu0 0.0
    %124 = vmatprep.subr.mxu0 0.0
    %125 = vmatpush1.msra.mxu0 0.0
    %126 = vmatprep.subr.mxu0 0.0
    %127 = vmatpush1.msra.mxu0 0.0
    %128 = vmatprep.subr.mxu0 0.0
    %129 = vmatpush1.msra.mxu0 0.0
    %130 = vmatprep.subr.mxu0 0.0
    %131 = vmatpush1.msra.mxu0 0.0
    %132 = vmatprep.subr.mxu0 0.0
    %133 = vmatpush1.msra.mxu0 0.0
    %134 = vmatprep.subr.mxu0 0.0
    %135 = vmatpush1.msra.mxu0 0.0
    %136 = vmatprep.subr.mxu0 0.0
    %137 = vmatpush1.msra.mxu0 0.0
    %138 = vmatprep.subr.mxu0 0.0
    %139 = vmatpush1.msra.mxu0 0.0
    %140 = vmatprep.subr.mxu0 0.0
    %141 = vmatpush1.msra.mxu0 0.0
    %142 = vmatprep.subr.mxu0 0.0
    %143 = vmatpush1.msra.mxu0 %v102
    %144 = vmatprep.subr.mxu0 0.0
    %145 = vmatpush1.msra.mxu0 %v101
    %146 = vmatprep.subr.mxu0 0.0
    %147 = vmatpush2.msra.mxu0 0.0
    %148 = vmatprep.subr.mxu0 0.0
    %149 = vmatpush2.msra.mxu0 0.0
    %150 = vmatprep.subr.mxu0 0.0
    %151 = vmatpush2.msra.mxu0 0.0
    %152 = vmatprep.subr.mxu0 0.0
    %153 = vmatpush2.msra.mxu0 0.0
    %154 = vmatprep.subr.mxu0 0.0
    %155 = vmatpush2.msra.mxu0 0.0
    %156 = vmatprep.subr.mxu0 0.0
    %157 = vmatpush2.msra.mxu0 0.0
    %158 = vmatprep.subr.mxu0 0.0
    %159 = vmatpush2.msra.mxu0 0.0
    %160 = vmatprep.subr.mxu0 0.0
    %161 = vmatpush2.msra.mxu0 0.0
    %162 = vmatprep.subr.mxu0 0.0
    %163 = vmatpush2.msra.mxu0 0.0
    %164 = vmatprep.subr.mxu0 0.0
    %165 = vmatpush2.msra.mxu0 0.0
    %166 = vmatprep.subr.mxu0 0.0
    %167 = vmatpush2.msra.mxu0 0.0
    %168 = vmatprep.subr.mxu0 0.0
    %169 = vmatpush2.msra.mxu0 0.0
    %170 = vmatprep.subr.mxu0 0.0
    %171 = vmatpush2.msra.mxu0 0.0
    %172 = vmatprep.subr.mxu0 0.0
    %173 = vmatpush2.msra.mxu0 0.0
    %174 = vmatprep.subr.mxu0 0.0
    %175 = vmatpush2.msra.mxu0 0.0
    %176 = vmatprep.subr.mxu0 0.0
    %177 = vmatpush2.msra.mxu0 0.0
    %178 = vmatprep.mubr.f32.mxu0 0.0
    %179 = vmatmul.mubr.f32.gmra.mxu0 %v112
    %v180 = vpop.f32.mrf.mxu0
    %v181 = vadd.f32 %v108, %v180
    %v182 = vpop.f32.mrf.mxu0
    %183 = vdwg.mxu0
    %184 = vst [vmem:[#allocation2] sm:$0x3] %v181
    // Predicated region
    $region18: #{darknet_forward.11} parent=1 // pred_check
      _
    $region19: #{darknet_forward.11} parent=1 // pred_check_branch
      %186 = sbr.rel (0) target = $region21
    $region20: #{darknet_forward.11} parent=1 // pred_region
      %s188 = ssub.s32 32, 32
      %189 = vsyncadd [#allocation3], %s188
      %s191 = sshll.u32 [#allocation2], 4
      %s192 = int_to_ptr.vmem [resolvable:$true] %s191
      %194 = dma.vmem_to_hbm [thread:$0]  %s192, 32, %s4, [#allocation3]
    $region21: #{darknet_forward.11} parent=1 // pred_fallthru
      _
    // Predicated region
    $region22: #{darknet_forward.11} parent=1 // pred_check
      _
    $region23: #{darknet_forward.11} parent=1 // pred_check_branch
      %196 = sbr.rel (0) target = $region25
    $region24: #{darknet_forward.11} parent=1 // pred_region
      %197 = dma.done [#allocation3], 32
    $region25: #{darknet_forward.11} parent=1 // pred_fallthru
      _
    %198 = vsyncpa [#allocation3], 1

</llo_original>
